<compile_context>
chip_gen: v6e
topology: v6e:2x2x1
jax: 0.10.0
libtpu: 0.0.40
codegen_flags: <defaults>
</compile_context>

<pallas_src>
import jax
import jax.numpy as jnp
from jax.experimental import pallas as pl
from jax.experimental.pallas import tpu as pltpu


def _add_conv1x1_kernel(a_ref, b_ref, w_ref, o_ref):
    # a_ref, b_ref: (Cin, HW) f32  -- resident across grid steps (index map -> (0,0))
    # w_ref:        (tile_n, Cin) bf16 weight tile, native (Cout, Cin) layout
    # o_ref:        (tile_n, HW) f32 output tile
    x = (a_ref[...] + b_ref[...]).astype(jnp.bfloat16)   # f32 add on VPU, bf16 for MXU
    o_ref[...] = jnp.dot(                                 # canonical (M,K)x(K,N) matmul
        w_ref[...], x, preferred_element_type=jnp.float32
    ).astype(o_ref.dtype)


def add_conv1x1(x603, x588, weight, *, tile_n=512):
    """x603, x588: (1, Cin, H, W) float32.  weight: (Cout, Cin, 1, 1) float32."""
    N, Cin, H, W = x603.shape
    assert N == 1, "kernel specialised for the module's batch size of 1"
    Cout = weight.shape[0]
    assert weight.shape == (Cout, Cin, 1, 1)
    assert Cout % tile_n == 0
    HW = H * W

    # Free reshapes only -- no transpose / pad / slice in the wrapper.
    a = x603.reshape(Cin, HW)
    b = x588.reshape(Cin, HW)
    w = weight.reshape(Cout, Cin).astype(jnp.bfloat16)   # bf16 weight halves HBM traffic

    grid = (Cout // tile_n,)   # = 4 at tile_n=512: 2 steps/core on v7x, 4 on v5e/v6e.

    cost = pl.CostEstimate(
        flops=2 * HW * Cin * Cout,
        transcendentals=0,
        bytes_accessed=2 * Cin * HW * 4 + Cout * Cin * 2 + Cout * HW * 4,
    )

    out = pl.pallas_call(
        _add_conv1x1_kernel,
        out_shape=jax.ShapeDtypeStruct((Cout, HW), jnp.float32),
        grid_spec=pltpu.PrefetchScalarGridSpec(
            num_scalar_prefetch=0,
            grid=grid,
            in_specs=[
                pl.BlockSpec((Cin, HW), lambda j: (0, 0)),       # x603 (resident)
                pl.BlockSpec((Cin, HW), lambda j: (0, 0)),       # x588 (resident)
                pl.BlockSpec((tile_n, Cin), lambda j: (j, 0)),   # bf16 weight tile
            ],
            out_specs=pl.BlockSpec((tile_n, HW), lambda j: (j, 0)),
        ),
        compiler_params=pltpu.CompilerParams(
            dimension_semantics=("parallel",),
        ),
        cost_estimate=cost,
    )(a, b, w)

    # (Cout, H*W) -> (1, Cout, H, W): free reshape, matches NCHW conv output.
    return out.reshape(N, Cout, H, W)


if __name__ == "__main__":
    key = jax.random.PRNGKey(0)
    k1, k2, k3 = jax.random.split(key, 3)

    # Shapes implied by the module's forward pass.
    N, Cin, H, W, Cout = 1, 512, 7, 7, 2048
    x603 = jax.random.normal(k1, (N, Cin, H, W), dtype=jnp.float32)
    x588 = jax.random.normal(k2, (N, Cin, H, W), dtype=jnp.float32)
    # Deterministic synthetic conv weight (Conv2d(512, 2048, 1, bias=False)).
    weight = jax.random.normal(k3, (Cout, Cin, 1, 1), dtype=jnp.float32) * 0.02

    out = jax.block_until_ready(add_conv1x1(x603, x588, weight))
    assert out.shape == (N, Cout, H, W), out.shape

    # 1) Tight check against a numerics-matched bf16 reference (same MXU path).
    xsum_bf16 = (x603 + x588).reshape(Cin, H * W).astype(jnp.bfloat16)
    w_bf16 = weight.reshape(Cout, Cin).astype(jnp.bfloat16)
    ref_bf16 = jax.lax.dot_general(
        w_bf16, xsum_bf16,
        dimension_numbers=(((1,), (0,)), ((), ())),
        preferred_element_type=jnp.float32,
    ).reshape(N, Cout, H, W)
    assert jnp.allclose(out, ref_bf16, atol=1e-3, rtol=1e-3), float(
        jnp.max(jnp.abs(out - ref_bf16))
    )

    # 2) Loose check against the full-f32 reference (bf16 weight/input error budget).
    ref_f32 = jnp.einsum("nchw,oc->nohw", x603 + x588, weight.reshape(Cout, Cin))
    assert jnp.allclose(out, ref_f32, atol=5e-2, rtol=5e-2), float(
        jnp.max(jnp.abs(out - ref_f32))
    )

    print("KERNEL_OK")
</pallas_src>

<mosaic_0001>
module attributes {stable_mosaic.version = 11 : i64} {
  func.func @_add_conv1x1_kernel(%arg0: i32, %arg1: memref<512x49xf32, #tpu.memory_space<vmem>>, %arg2: memref<512x49xf32, #tpu.memory_space<vmem>>, %arg3: memref<512x512xbf16, #tpu.memory_space<vmem>>, %arg4: memref<512x49xf32, #tpu.memory_space<vmem>>) attributes {dimension_semantics = [#tpu.dimension_semantics<parallel>], iteration_bounds = array<i64: 4>, scalar_prefetch = 0 : i64, scratch_operands = 0 : i64, tpu.core_type = #tpu.core_type<tc>, window_params = [{pipeline_mode = #tpu.pipeline_mode<synchronous>, transform_indices = @transform_0, window_bounds = array<i64: 512, 49>}, {pipeline_mode = #tpu.pipeline_mode<synchronous>, transform_indices = @transform_1, window_bounds = array<i64: 512, 49>}, {transform_indices = @transform_2, window_bounds = array<i64: 512, 512>}, {transform_indices = @transform_3, window_bounds = array<i64: 512, 49>}]} {
    %c0 = arith.constant 0 : index
    %c0_0 = arith.constant 0 : index
    %0 = vector.load %arg1[%c0, %c0_0] : memref<512x49xf32, #tpu.memory_space<vmem>>, vector<512x49xf32>
    %c0_1 = arith.constant 0 : index
    %c0_2 = arith.constant 0 : index
    %1 = vector.load %arg2[%c0_1, %c0_2] : memref<512x49xf32, #tpu.memory_space<vmem>>, vector<512x49xf32>
    %2 = arith.addf %0, %1 : vector<512x49xf32>
    %3 = arith.truncf %2 : vector<512x49xf32> to vector<512x49xbf16>
    %c0_3 = arith.constant 0 : index
    %c0_4 = arith.constant 0 : index
    %4 = vector.load %arg3[%c0_3, %c0_4] : memref<512x512xbf16, #tpu.memory_space<vmem>>, vector<512x512xbf16>
    %cst = arith.constant dense<0.000000e+00> : vector<512x49xf32>
    %5 = tpu.matmul %4, %3, %cst {dimension_numbers = #tpu.dot_dimension_numbers<[1], [0], [0], [1], [0, 0, 1, 1], [], []>} : vector<512x512xbf16>, vector<512x49xbf16>, vector<512x49xf32> -> vector<512x49xf32>
    %c0_5 = arith.constant 0 : index
    %c0_6 = arith.constant 0 : index
    %6 = vector.load %arg4[%c0_5, %c0_6] : memref<512x49xf32, #tpu.memory_space<vmem>>, vector<512x49xf32>
    tpu.vector_store %arg4[%c0_5, %c0_6], %5 {strides = array<i32>} : memref<512x49xf32, #tpu.memory_space<vmem>>, vector<512x49xf32>,
    return
  }
  func.func @transform_0(%arg0: i32) -> (i32, i32) {
    %c0_i32 = arith.constant 0 : i32
    %c0_i32_0 = arith.constant 0 : i32
    %c0_i32_1 = arith.constant 0 : i32
    return %c0_i32, %c0_i32_0 : i32, i32
  }
  func.func @transform_1(%arg0: i32) -> (i32, i32) {
    %c0_i32 = arith.constant 0 : i32
    %c0_i32_0 = arith.constant 0 : i32
    %c0_i32_1 = arith.constant 0 : i32
    return %c0_i32, %c0_i32_0 : i32, i32
  }
  func.func @transform_2(%arg0: i32) -> (i32, i32) {
    %c0_i32 = arith.constant 0 : i32
    %c0_i32_0 = arith.constant 0 : i32
    return %arg0, %c0_i32 : i32, i32
  }
  func.func @transform_3(%arg0: i32) -> (i32, i32) {
    %c0_i32 = arith.constant 0 : i32
    %c0_i32_0 = arith.constant 0 : i32
    return %arg0, %c0_i32 : i32, i32
  }
}

</mosaic_0001>

<llo_original>
// kernel: tpu_custom_call.1
$region0: #{tpu_custom_call.1}
  #allocation0 [shape = 'u32[]', space=smem, size = 0x4, offset = 0x4, fixed_abs, tag = 'smem constant byte address 0x4 - core index']
  #allocation1 [shape = 'u32[144,128]{1,0:T(1,128)}', space=vmem, size = 0x12000, scoped, tag = 'internal scratch']
  %s0 = inlined_call_operand.vmem [shape: f32[512,49], index: 0, kind: input, shape index: {}]
  %s1 = inlined_call_operand.vmem [shape: f32[512,49], index: 1, kind: input, shape index: {}]
  %s2 = inlined_call_operand.hbm [shape: bf16[2048,512], index: 2, kind: input, shape index: {}]
  %s3 = inlined_call_operand.vmem [shape: f32[2048,49], index: 3, kind: output, shape index: {}]
  %s4 = sld [smem:[#allocation0]]
  $region49: #{tpu_custom_call.1} parent=0
    _
  %s6 = ssub.s32 1, %s4
  %s7 = scalar_select 0, %s6, %s4
  $region1: #{tpu_custom_call.1} parent=0
    #allocation2 [shape = 'u8[1048576]{0}', space=vmem, size = 0x100000, scoped, tag = 'input window, operand 2']
    #allocation3 [shape = 's32[2]{0}', space=sflag, size = 0x8, scoped, tag = 'scoped memory for tpu_custom_call.1']
    %8 = vsyncpa [#allocation3], 0
    %s9 = scalar_lea.sflag [#allocation3], 1
    %10 = vsyncpa %s9, 0
    loop: start=0, step=1, limit=6
    $region2: #{tpu_custom_call.1} parent=1 // loop_pre_header
      _
    $region3: #{tpu_custom_call.1} parent=1 // loop_header
      %s12 = sphi 0, %s16
      %p13 = scmp.ge.s32.totalorder %s12, 6
      %s20 = sphi 0, %s20
      %s22 = sphi 0, %s20
      %s23 = sphi 0, %s22
      %s37 = sphi 0, %s23
      %s41 = sphi 0, %s41
      %s43 = sphi 0, %s41
      %s44 = sphi 0, %s43
      %s58 = sphi 0, %s44
      %s64 = sphi 0, %s66
      %s67 = sphi 0, %s64
      %s68 = sphi 0, %s67
      %s84 = sphi 0, %s68
      %s90 = sphi 0, %s92
      %s93 = sphi 0, %s90
      %s94 = sphi 0, %s93
      %s110 = sphi 0, %s94
    $region4: #{tpu_custom_call.1} parent=1 // loop_header_branch
      %15 = sbr.rel (%p13) target = $region8
    $region5: #{tpu_custom_call.1} parent=1 // loop_body
      %s17 = ssub.s32 %s12, 1
      %s18 = ssub.s32 %s12, 2
      %s19 = sadd.s32 %s12, 1
      %s21 = sadd.s32 %s20, 1
      %p24 = scmp.eq.s32.totalorder %s12, 3
      %p25 = scmp.ne.s32.totalorder %s20, %s22
      %p26 = scmp.eq.s32.totalorder %s12, 0
      %p27 = por %p25, %p26
      %p28 = scmp.ne.s32.totalorder %s20, %s22
      %p29 = scmp.eq.s32.totalorder %s17, 3
      %p30 = por %p28, %p29
      %p31 = scmp.ne.s32.totalorder %s22, %s23
      %p32 = scmp.eq.s32.totalorder %s17, 0
      %p33 = por %p31, %p32
      %p34 = scmp.ne.s32.totalorder %s22, %s23
      %p35 = scmp.eq.s32.totalorder %s18, 3
      %p36 = por %p34, %p35
      %p38 = scmp.ne.s32.totalorder %s23, %s37
      %p39 = scmp.eq.s32.totalorder %s18, 0
      %p40 = por %p38, %p39
      %s42 = sadd.s32 %s41, 1
      %p45 = scmp.eq.s32.totalorder %s12, 3
      %p46 = scmp.ne.s32.totalorder %s41, %s43
      %p47 = scmp.eq.s32.totalorder %s12, 0
      %p48 = por %p46, %p47
      %p49 = scmp.ne.s32.totalorder %s41, %s43
      %p50 = scmp.eq.s32.totalorder %s17, 3
      %p51 = por %p49, %p50
      %p52 = scmp.ne.s32.totalorder %s43, %s44
      %p53 = scmp.eq.s32.totalorder %s17, 0
      %p54 = por %p52, %p53
      %p55 = scmp.ne.s32.totalorder %s43, %s44
      %p56 = scmp.eq.s32.totalorder %s18, 3
      %p57 = por %p55, %p56
      %p59 = scmp.ne.s32.totalorder %s44, %s58
      %p60 = scmp.eq.s32.totalorder %s18, 0
      %p61 = por %p59, %p60
      %s62 = ssub.s32 %s12, %s19
      %p63 = scmp.eq.s32.totalorder %s62, 0
      %s65 = sadd.s32 %s64, 1
      %s66 = scalar_select %p63, %s64, %s65
      %p69 = pneg %p63
      %p70 = scmp.eq.s32.totalorder %s12, 3
      %p71 = por %p69, %p70
      %p72 = scmp.ne.s32.totalorder %s64, %s67
      %p73 = scmp.eq.s32.totalorder %s12, 0
      %p74 = por %p72, %p73
      %p75 = scmp.ne.s32.totalorder %s64, %s67
      %p76 = scmp.eq.s32.totalorder %s17, 3
      %p77 = por %p75, %p76
      %p78 = scmp.ne.s32.totalorder %s67, %s68
      %p79 = scmp.eq.s32.totalorder %s17, 0
      %p80 = por %p78, %p79
      %p81 = scmp.ne.s32.totalorder %s67, %s68
      %p82 = scmp.eq.s32.totalorder %s18, 3
      %p83 = por %p81, %p82
      %p85 = scmp.ne.s32.totalorder %s68, %s84
      %p86 = scmp.eq.s32.totalorder %s18, 0
      %p87 = por %p85, %p86
      %s88 = ssub.s32 %s12, %s19
      %p89 = scmp.eq.s32.totalorder %s88, 0
      %s91 = sadd.s32 %s90, 1
      %s92 = scalar_select %p89, %s90, %s91
      %p95 = pneg %p89
      %p96 = scmp.eq.s32.totalorder %s12, 3
      %p97 = por %p95, %p96
      %p98 = scmp.ne.s32.totalorder %s90, %s93
      %p99 = scmp.eq.s32.totalorder %s12, 0
      %p100 = por %p98, %p99
      %p101 = scmp.ne.s32.totalorder %s90, %s93
      %p102 = scmp.eq.s32.totalorder %s17, 3
      %p103 = por %p101, %p102
      %p104 = scmp.ne.s32.totalorder %s93, %s94
      %p105 = scmp.eq.s32.totalorder %s17, 0
      %p106 = por %p104, %p105
      %p107 = scmp.ne.s32.totalorder %s93, %s94
      %p108 = scmp.eq.s32.totalorder %s18, 3
      %p109 = por %p107, %p108
      %p111 = scmp.ne.s32.totalorder %s94, %s110
      %p112 = scmp.eq.s32.totalorder %s18, 0
      %p113 = por %p111, %p112
      %p114 = scmp.le.s32.totalorder 1, %s12
      %p115 = scmp.lt.s32.totalorder %s12, 5
      %p116 = pnand %p114, %p115
      %p117 = pneg %p116
      // Predicated region
      $region9: #{tpu_custom_call.1} parent=5 // pred_check
        _
      $region10: #{tpu_custom_call.1} parent=5 // pred_check_branch
        %119 = sbr.rel (%p116) target = $region12
      $region11: #{tpu_custom_call.1} parent=5 // pred_region
        %s120 = ssub.s32 %s12, 1
        // Predicated region
        $region13: #{tpu_custom_call.1} parent=11 // pred_check
          %p121 = pneg %p33
        $region14: #{tpu_custom_call.1} parent=11 // pred_check_branch
          %123 = sbr.rel (%p121) target = $region16
        $region15: #{tpu_custom_call.1} parent=11 // pred_region
          _
        $region16: #{tpu_custom_call.1} parent=11 // pred_fallthru
          _
        // Predicated region
        $region17: #{tpu_custom_call.1} parent=11 // pred_check
          %p124 = pneg %p54
        $region18: #{tpu_custom_call.1} parent=11 // pred_check_branch
          %126 = sbr.rel (%p124) target = $region20
        $region19: #{tpu_custom_call.1} parent=11 // pred_region
          _
        $region20: #{tpu_custom_call.1} parent=11 // pred_fallthru
          _
      $region12: #{tpu_custom_call.1} parent=5 // pred_fallthru
        _
      %p127 = scmp.lt.s32.totalorder %s12, 4
      // Predicated region
      $region21: #{tpu_custom_call.1} parent=5 // pred_check
        %p128 = pneg %p127
      $region22: #{tpu_custom_call.1} parent=5 // pred_check_branch
        %130 = sbr.rel (%p128) target = $region24
      $region23: #{tpu_custom_call.1} parent=5 // pred_region
        // Predicated region
        $region25: #{tpu_custom_call.1} parent=23 // pred_check
          %p131 = pneg %p74
        $region26: #{tpu_custom_call.1} parent=23 // pred_check_branch
          %133 = sbr.rel (%p131) target = $region28
        $region27: #{tpu_custom_call.1} parent=23 // pred_region
          %s134 = sand.u32 %s64, 1
          %s135 = scalar_lea.sflag [#allocation3], %s134
          %s136 = sand.u32 %s64, 1
          %s137 = smul.addr %s136, 1024
          %s138 = scalar_lea.vmem [#allocation2], %s137
          %s139 = smul.u32 64, %s12
          %s141 = ssub.s32 16384, 16384
          %142 = vsyncadd %s135, %s141
          %s143 = smul.addr %s139, 4
          %s144 = smul.addr %s143, 64
          %s145 = scalar_lea.hbm %s2, %s144
          %s146 = sshll.u32 %s138, 4
          %s147 = int_to_ptr.vmem [resolvable:$true] %s146
          %152 = dma.hbm_to_vmem [thread:$0]  %s145, 16384, %s147, %s135, 256, 256, 16
        $region28: #{tpu_custom_call.1} parent=23 // pred_fallthru
          _
      $region24: #{tpu_custom_call.1} parent=5 // pred_fallthru
        _
      %p153 = scmp.le.s32.totalorder 1, %s12
      %p154 = scmp.lt.s32.totalorder %s12, 5
      %p155 = pnand %p153, %p154
      %p156 = pneg %p155
      // Predicated region
      $region29: #{tpu_custom_call.1} parent=5 // pred_check
        _
      $region30: #{tpu_custom_call.1} parent=5 // pred_check_branch
        %158 = sbr.rel (%p155) target = $region32
      $region31: #{tpu_custom_call.1} parent=5 // pred_region
        %s159 = ssub.s32 %s12, 1
        %s160 = sand.u32 %s67, 1
        %s161 = scalar_lea.sflag [#allocation3], %s160
        %s162 = sand.u32 %s67, 1
        %s163 = smul.addr %s162, 1024
        %s164 = scalar_lea.vmem [#allocation2], %s163
        // Predicated region
        $region33: #{tpu_custom_call.1} parent=31 // pred_check
          %p165 = pneg %p80
        $region34: #{tpu_custom_call.1} parent=31 // pred_check_branch
          %167 = sbr.rel (%p165) target = $region36
        $region35: #{tpu_custom_call.1} parent=31 // pred_region
          %168 = dma.done %s161, 16384
        $region36: #{tpu_custom_call.1} parent=31 // pred_fallthru
          _
        %p169 = pneg %p33
        %p170 = pneg %p30
        %p171 = pneg %p54
        %p172 = pneg %p51
        %s173 = sand.u32 %s67, 1
        %s174 = scalar_lea.sflag [#allocation3], %s173
        %s175 = sand.u32 %s67, 1
        %s176 = smul.addr %s175, 1024
        %s177 = scalar_lea.vmem [#allocation2], %s176
        %p178 = pneg %p80
        %p179 = pneg %p77
        %p180 = pneg %p106
        %p181 = pneg %p103
        %s182 = smul.u32 64, %s17
        %p183 = scmp.lt.s32.totalorder %s182, 255
        %s184 = scalar_select %p183, %s182, 255
        %s185 = smul.addr %s184, 8
        %s186 = scalar_lea.vmem %s3, %s185
        %s187 = smul.u32 64, %s17
        %s188 = smul.u32 64, %s17
        %p189 = scmp.lt.s32.totalorder %s188, 255
        %s190 = scalar_select %p189, %s188, 255
        %s191 = smul.addr %s190, 8
        %s192 = scalar_lea.vmem %s3, %s191
        %s193 = smul.u32 64, %s17
        %v195 = vld [vmem:[%s0] sm:$0xff]
        %v196 = vld [vmem:[%s0 + $0x8] sm:$0xff]
        %v197 = vld [vmem:[%s0 + $0x10] sm:$0xff]
        %v198 = vld [vmem:[%s0 + $0x18] sm:$0xff]
        %v199 = vld [vmem:[%s0 + $0x20] sm:$0xff]
        %v200 = vld [vmem:[%s0 + $0x28] sm:$0xff]
        %v201 = vld [vmem:[%s0 + $0x30] sm:$0xff]
        %v202 = vld [vmem:[%s0 + $0x38] sm:$0xff]
        %v203 = vld [vmem:[%s0 + $0x40] sm:$0xff]
        %v204 = vld [vmem:[%s0 + $0x48] sm:$0xff]
        %v205 = vld [vmem:[%s0 + $0x50] sm:$0xff]
        %v206 = vld [vmem:[%s0 + $0x58] sm:$0xff]
        %v207 = vld [vmem:[%s0 + $0x60] sm:$0xff]
        %v208 = vld [vmem:[%s0 + $0x68] sm:$0xff]
        %v209 = vld [vmem:[%s0 + $0x70] sm:$0xff]
        %v210 = vld [vmem:[%s0 + $0x78] sm:$0xff]
        %v211 = vld [vmem:[%s0 + $0x80] sm:$0xff]
        %v212 = vld [vmem:[%s0 + $0x88] sm:$0xff]
        %v213 = vld [vmem:[%s0 + $0x90] sm:$0xff]
        %v214 = vld [vmem:[%s0 + $0x98] sm:$0xff]
        %v215 = vld [vmem:[%s0 + $0xa0] sm:$0xff]
        %v216 = vld [vmem:[%s0 + $0xa8] sm:$0xff]
        %v217 = vld [vmem:[%s0 + $0xb0] sm:$0xff]
        %v218 = vld [vmem:[%s0 + $0xb8] sm:$0xff]
        %v219 = vld [vmem:[%s0 + $0xc0] sm:$0xff]
        %v220 = vld [vmem:[%s0 + $0xc8] sm:$0xff]
        %v221 = vld [vmem:[%s0 + $0xd0] sm:$0xff]
        %v222 = vld [vmem:[%s0 + $0xd8] sm:$0xff]
        %v223 = vld [vmem:[%s0 + $0xe0] sm:$0xff]
        %v224 = vld [vmem:[%s0 + $0xe8] sm:$0xff]
        %v225 = vld [vmem:[%s0 + $0xf0] sm:$0xff]
        %v226 = vld [vmem:[%s0 + $0xf8] sm:$0xff]
        %v227 = vld [vmem:[%s0 + $0x100] sm:$0xff]
        %v228 = vld [vmem:[%s0 + $0x108] sm:$0xff]
        %v229 = vld [vmem:[%s0 + $0x110] sm:$0xff]
        %v230 = vld [vmem:[%s0 + $0x118] sm:$0xff]
        %v231 = vld [vmem:[%s0 + $0x120] sm:$0xff]
        %v232 = vld [vmem:[%s0 + $0x128] sm:$0xff]
        %v233 = vld [vmem:[%s0 + $0x130] sm:$0xff]
        %v234 = vld [vmem:[%s0 + $0x138] sm:$0xff]
        %v235 = vld [vmem:[%s0 + $0x140] sm:$0xff]
        %v236 = vld [vmem:[%s0 + $0x148] sm:$0xff]
        %v237 = vld [vmem:[%s0 + $0x150] sm:$0xff]
        %v238 = vld [vmem:[%s0 + $0x158] sm:$0xff]
        %v239 = vld [vmem:[%s0 + $0x160] sm:$0xff]
        %v240 = vld [vmem:[%s0 + $0x168] sm:$0xff]
        %v241 = vld [vmem:[%s0 + $0x170] sm:$0xff]
        %v242 = vld [vmem:[%s0 + $0x178] sm:$0xff]
        %v243 = vld [vmem:[%s0 + $0x180] sm:$0xff]
        %v244 = vld [vmem:[%s0 + $0x188] sm:$0xff]
        %v245 = vld [vmem:[%s0 + $0x190] sm:$0xff]
        %v246 = vld [vmem:[%s0 + $0x198] sm:$0xff]
        %v247 = vld [vmem:[%s0 + $0x1a0] sm:$0xff]
        %v248 = vld [vmem:[%s0 + $0x1a8] sm:$0xff]
        %v249 = vld [vmem:[%s0 + $0x1b0] sm:$0xff]
        %v250 = vld [vmem:[%s0 + $0x1b8] sm:$0xff]
        %v251 = vld [vmem:[%s0 + $0x1c0] sm:$0xff]
        %v252 = vld [vmem:[%s0 + $0x1c8] sm:$0xff]
        %v253 = vld [vmem:[%s0 + $0x1d0] sm:$0xff]
        %v254 = vld [vmem:[%s0 + $0x1d8] sm:$0xff]
        %v255 = vld [vmem:[%s0 + $0x1e0] sm:$0xff]
        %v256 = vld [vmem:[%s0 + $0x1e8] sm:$0xff]
        %v257 = vld [vmem:[%s0 + $0x1f0] sm:$0xff]
        %v258 = vld [vmem:[%s0 + $0x1f8] sm:$0xff]
        %v259 = vld [vmem:[%s1] sm:$0xff]
        %v260 = vld [vmem:[%s1 + $0x8] sm:$0xff]
        %v261 = vld [vmem:[%s1 + $0x10] sm:$0xff]
        %v262 = vld [vmem:[%s1 + $0x18] sm:$0xff]
        %v263 = vld [vmem:[%s1 + $0x20] sm:$0xff]
        %v264 = vld [vmem:[%s1 + $0x28] sm:$0xff]
        %v265 = vld [vmem:[%s1 + $0x30] sm:$0xff]
        %v266 = vld [vmem:[%s1 + $0x38] sm:$0xff]
        %v267 = vld [vmem:[%s1 + $0x40] sm:$0xff]
        %v268 = vld [vmem:[%s1 + $0x48] sm:$0xff]
        %v269 = vld [vmem:[%s1 + $0x50] sm:$0xff]
        %v270 = vld [vmem:[%s1 + $0x58] sm:$0xff]
        %v271 = vld [vmem:[%s1 + $0x60] sm:$0xff]
        %v272 = vld [vmem:[%s1 + $0x68] sm:$0xff]
        %v273 = vld [vmem:[%s1 + $0x70] sm:$0xff]
        %v274 = vld [vmem:[%s1 + $0x78] sm:$0xff]
        %v275 = vld [vmem:[%s1 + $0x80] sm:$0xff]
        %v276 = vld [vmem:[%s1 + $0x88] sm:$0xff]
        %v277 = vld [vmem:[%s1 + $0x90] sm:$0xff]
        %v278 = vld [vmem:[%s1 + $0x98] sm:$0xff]
        %v279 = vld [vmem:[%s1 + $0xa0] sm:$0xff]
        %v280 = vld [vmem:[%s1 + $0xa8] sm:$0xff]
        %v281 = vld [vmem:[%s1 + $0xb0] sm:$0xff]
        %v282 = vld [vmem:[%s1 + $0xb8] sm:$0xff]
        %v283 = vld [vmem:[%s1 + $0xc0] sm:$0xff]
        %v284 = vld [vmem:[%s1 + $0xc8] sm:$0xff]
        %v285 = vld [vmem:[%s1 + $0xd0] sm:$0xff]
        %v286 = vld [vmem:[%s1 + $0xd8] sm:$0xff]
        %v287 = vld [vmem:[%s1 + $0xe0] sm:$0xff]
        %v288 = vld [vmem:[%s1 + $0xe8] sm:$0xff]
        %v289 = vld [vmem:[%s1 + $0xf0] sm:$0xff]
        %v290 = vld [vmem:[%s1 + $0xf8] sm:$0xff]
        %v291 = vld [vmem:[%s1 + $0x100] sm:$0xff]
        %v292 = vld [vmem:[%s1 + $0x108] sm:$0xff]
        %v293 = vld [vmem:[%s1 + $0x110] sm:$0xff]
        %v294 = vld [vmem:[%s1 + $0x118] sm:$0xff]
        %v295 = vld [vmem:[%s1 + $0x120] sm:$0xff]
        %v296 = vld [vmem:[%s1 + $0x128] sm:$0xff]
        %v297 = vld [vmem:[%s1 + $0x130] sm:$0xff]
        %v298 = vld [vmem:[%s1 + $0x138] sm:$0xff]
        %v299 = vld [vmem:[%s1 + $0x140] sm:$0xff]
        %v300 = vld [vmem:[%s1 + $0x148] sm:$0xff]
        %v301 = vld [vmem:[%s1 + $0x150] sm:$0xff]
        %v302 = vld [vmem:[%s1 + $0x158] sm:$0xff]
        %v303 = vld [vmem:[%s1 + $0x160] sm:$0xff]
        %v304 = vld [vmem:[%s1 + $0x168] sm:$0xff]
        %v305 = vld [vmem:[%s1 + $0x170] sm:$0xff]
        %v306 = vld [vmem:[%s1 + $0x178] sm:$0xff]
        %v307 = vld [vmem:[%s1 + $0x180] sm:$0xff]
        %v308 = vld [vmem:[%s1 + $0x188] sm:$0xff]
        %v309 = vld [vmem:[%s1 + $0x190] sm:$0xff]
        %v310 = vld [vmem:[%s1 + $0x198] sm:$0xff]
        %v311 = vld [vmem:[%s1 + $0x1a0] sm:$0xff]
        %v312 = vld [vmem:[%s1 + $0x1a8] sm:$0xff]
        %v313 = vld [vmem:[%s1 + $0x1b0] sm:$0xff]
        %v314 = vld [vmem:[%s1 + $0x1b8] sm:$0xff]
        %v315 = vld [vmem:[%s1 + $0x1c0] sm:$0xff]
        %v316 = vld [vmem:[%s1 + $0x1c8] sm:$0xff]
        %v317 = vld [vmem:[%s1 + $0x1d0] sm:$0xff]
        %v318 = vld [vmem:[%s1 + $0x1d8] sm:$0xff]
        %v319 = vld [vmem:[%s1 + $0x1e0] sm:$0xff]
        %v320 = vld [vmem:[%s1 + $0x1e8] sm:$0xff]
        %v321 = vld [vmem:[%s1 + $0x1f0] sm:$0xff]
        %v322 = vld [vmem:[%s1 + $0x1f8] sm:$0xff]
        %v323 = vadd.f32 %v195, %v259
        %v324 = vadd.f32 %v196, %v260
        %v325 = vadd.f32 %v197, %v261
        %v326 = vadd.f32 %v198, %v262
        %v327 = vadd.f32 %v199, %v263
        %v328 = vadd.f32 %v200, %v264
        %v329 = vadd.f32 %v201, %v265
        %v330 = vadd.f32 %v202, %v266
        %v331 = vadd.f32 %v203, %v267
        %v332 = vadd.f32 %v204, %v268
        %v333 = vadd.f32 %v205, %v269
        %v334 = vadd.f32 %v206, %v270
        %v335 = vadd.f32 %v207, %v271
        %v336 = vadd.f32 %v208, %v272
        %v337 = vadd.f32 %v209, %v273
        %v338 = vadd.f32 %v210, %v274
        %v339 = vadd.f32 %v211, %v275
        %v340 = vadd.f32 %v212, %v276
        %v341 = vadd.f32 %v213, %v277
        %v342 = vadd.f32 %v214, %v278
        %v343 = vadd.f32 %v215, %v279
        %v344 = vadd.f32 %v216, %v280
        %v345 = vadd.f32 %v217, %v281
        %v346 = vadd.f32 %v218, %v282
        %v347 = vadd.f32 %v219, %v283
        %v348 = vadd.f32 %v220, %v284
        %v349 = vadd.f32 %v221, %v285
        %v350 = vadd.f32 %v222, %v286
        %v351 = vadd.f32 %v223, %v287
        %v352 = vadd.f32 %v224, %v288
        %v353 = vadd.f32 %v225, %v289
        %v354 = vadd.f32 %v226, %v290
        %v355 = vadd.f32 %v227, %v291
        %v356 = vadd.f32 %v228, %v292
        %v357 = vadd.f32 %v229, %v293
        %v358 = vadd.f32 %v230, %v294
        %v359 = vadd.f32 %v231, %v295
        %v360 = vadd.f32 %v232, %v296
        %v361 = vadd.f32 %v233, %v297
        %v362 = vadd.f32 %v234, %v298
        %v363 = vadd.f32 %v235, %v299
        %v364 = vadd.f32 %v236, %v300
        %v365 = vadd.f32 %v237, %v301
        %v366 = vadd.f32 %v238, %v302
        %v367 = vadd.f32 %v239, %v303
        %v368 = vadd.f32 %v240, %v304
        %v369 = vadd.f32 %v241, %v305
        %v370 = vadd.f32 %v242, %v306
        %v371 = vadd.f32 %v243, %v307
        %v372 = vadd.f32 %v244, %v308
        %v373 = vadd.f32 %v245, %v309
        %v374 = vadd.f32 %v246, %v310
        %v375 = vadd.f32 %v247, %v311
        %v376 = vadd.f32 %v248, %v312
        %v377 = vadd.f32 %v249, %v313
        %v378 = vadd.f32 %v250, %v314
        %v379 = vadd.f32 %v251, %v315
        %v380 = vadd.f32 %v252, %v316
        %v381 = vadd.f32 %v253, %v317
        %v382 = vadd.f32 %v254, %v318
        %v383 = vadd.f32 %v255, %v319
        %v384 = vadd.f32 %v256, %v320
        %v385 = vadd.f32 %v257, %v321
        %v386 = vadd.f32 %v258, %v322
        %v387 = vpack.c.bf16 %v324, %v323
        %v388 = vpack.c.bf16 %v326, %v325
        %v389 = vpack.c.bf16 %v328, %v327
        %v390 = vpack.c.bf16 %v330, %v329
        %v391 = vpack.c.bf16 %v332, %v331
        %v392 = vpack.c.bf16 %v334, %v333
        %v393 = vpack.c.bf16 %v336, %v335
        %v394 = vpack.c.bf16 %v338, %v337
        %v395 = vpack.c.bf16 %v340, %v339
        %v396 = vpack.c.bf16 %v342, %v341
        %v397 = vpack.c.bf16 %v344, %v343
        %v398 = vpack.c.bf16 %v346, %v345
        %v399 = vpack.c.bf16 %v348, %v347
        %v400 = vpack.c.bf16 %v350, %v349
        %v401 = vpack.c.bf16 %v352, %v351
        %v402 = vpack.c.bf16 %v354, %v353
        %v403 = vpack.c.bf16 %v356, %v355
        %v404 = vpack.c.bf16 %v358, %v357
        %v405 = vpack.c.bf16 %v360, %v359
        %v406 = vpack.c.bf16 %v362, %v361
        %v407 = vpack.c.bf16 %v364, %v363
        %v408 = vpack.c.bf16 %v366, %v365
        %v409 = vpack.c.bf16 %v368, %v367
        %v410 = vpack.c.bf16 %v370, %v369
        %v411 = vpack.c.bf16 %v372, %v371
        %v412 = vpack.c.bf16 %v374, %v373
        %v413 = vpack.c.bf16 %v376, %v375
        %v414 = vpack.c.bf16 %v378, %v377
        %v415 = vpack.c.bf16 %v380, %v379
        %v416 = vpack.c.bf16 %v382, %v381
        %v417 = vpack.c.bf16 %v384, %v383
        %v418 = vpack.c.bf16 %v386, %v385
        %v419 = vld [vmem:[%s164] sm:$0xff]
        %v420 = vld [vmem:[%s164 + $0x8] sm:$0xff]
        %v421 = vld [vmem:[%s164 + $0x10] sm:$0xff]
        %v422 = vld [vmem:[%s164 + $0x18] sm:$0xff]
        %v423 = vld [vmem:[%s164 + $0x20] sm:$0xff]
        %v424 = vld [vmem:[%s164 + $0x28] sm:$0xff]
        %v425 = vld [vmem:[%s164 + $0x30] sm:$0xff]
        %v426 = vld [vmem:[%s164 + $0x38] sm:$0xff]
        %v427 = vld [vmem:[%s164 + $0x40] sm:$0xff]
        %v428 = vld [vmem:[%s164 + $0x48] sm:$0xff]
        %v429 = vld [vmem:[%s164 + $0x50] sm:$0xff]
        %v430 = vld [vmem:[%s164 + $0x58] sm:$0xff]
        %v431 = vld [vmem:[%s164 + $0x60] sm:$0xff]
        %v432 = vld [vmem:[%s164 + $0x68] sm:$0xff]
        %v433 = vld [vmem:[%s164 + $0x70] sm:$0xff]
        %v434 = vld [vmem:[%s164 + $0x78] sm:$0xff]
        %v435 = vld [vmem:[%s164 + $0x80] sm:$0xff]
        %v436 = vld [vmem:[%s164 + $0x88] sm:$0xff]
        %v437 = vld [vmem:[%s164 + $0x90] sm:$0xff]
        %v438 = vld [vmem:[%s164 + $0x98] sm:$0xff]
        %v439 = vld [vmem:[%s164 + $0xa0] sm:$0xff]
        %v440 = vld [vmem:[%s164 + $0xa8] sm:$0xff]
        %v441 = vld [vmem:[%s164 + $0xb0] sm:$0xff]
        %v442 = vld [vmem:[%s164 + $0xb8] sm:$0xff]
        %v443 = vld [vmem:[%s164 + $0xc0] sm:$0xff]
        %v444 = vld [vmem:[%s164 + $0xc8] sm:$0xff]
        %v445 = vld [vmem:[%s164 + $0xd0] sm:$0xff]
        %v446 = vld [vmem:[%s164 + $0xd8] sm:$0xff]
        %v447 = vld [vmem:[%s164 + $0xe0] sm:$0xff]
        %v448 = vld [vmem:[%s164 + $0xe8] sm:$0xff]
        %v449 = vld [vmem:[%s164 + $0xf0] sm:$0xff]
        %v450 = vld [vmem:[%s164 + $0xf8] sm:$0xff]
        %v451 = vld [vmem:[%s164 + $0x100] sm:$0xff]
        %v452 = vld [vmem:[%s164 + $0x108] sm:$0xff]
        %v453 = vld [vmem:[%s164 + $0x110] sm:$0xff]
        %v454 = vld [vmem:[%s164 + $0x118] sm:$0xff]
        %v455 = vld [vmem:[%s164 + $0x120] sm:$0xff]
        %v456 = vld [vmem:[%s164 + $0x128] sm:$0xff]
        %v457 = vld [vmem:[%s164 + $0x130] sm:$0xff]
        %v458 = vld [vmem:[%s164 + $0x138] sm:$0xff]
        %v459 = vld [vmem:[%s164 + $0x140] sm:$0xff]
        %v460 = vld [vmem:[%s164 + $0x148] sm:$0xff]
        %v461 = vld [vmem:[%s164 + $0x150] sm:$0xff]
        %v462 = vld [vmem:[%s164 + $0x158] sm:$0xff]
        %v463 = vld [vmem:[%s164 + $0x160] sm:$0xff]
        %v464 = vld [vmem:[%s164 + $0x168] sm:$0xff]
        %v465 = vld [vmem:[%s164 + $0x170] sm:$0xff]
        %v466 = vld [vmem:[%s164 + $0x178] sm:$0xff]
        %v467 = vld [vmem:[%s164 + $0x180] sm:$0xff]
        %v468 = vld [vmem:[%s164 + $0x188] sm:$0xff]
        %v469 = vld [vmem:[%s164 + $0x190] sm:$0xff]
        %v470 = vld [vmem:[%s164 + $0x198] sm:$0xff]
        %v471 = vld [vmem:[%s164 + $0x1a0] sm:$0xff]
        %v472 = vld [vmem:[%s164 + $0x1a8] sm:$0xff]
        %v473 = vld [vmem:[%s164 + $0x1b0] sm:$0xff]
        %v474 = vld [vmem:[%s164 + $0x1b8] sm:$0xff]
        %v475 = vld [vmem:[%s164 + $0x1c0] sm:$0xff]
        %v476 = vld [vmem:[%s164 + $0x1c8] sm:$0xff]
        %v477 = vld [vmem:[%s164 + $0x1d0] sm:$0xff]
        %v478 = vld [vmem:[%s164 + $0x1d8] sm:$0xff]
        %v479 = vld [vmem:[%s164 + $0x1e0] sm:$0xff]
        %v480 = vld [vmem:[%s164 + $0x1e8] sm:$0xff]
        %v481 = vld [vmem:[%s164 + $0x1f0] sm:$0xff]
        %v482 = vld [vmem:[%s164 + $0x1f8] sm:$0xff]
        %v483 = vld [vmem:[%s164 + $0x200] sm:$0xff]
        %v484 = vld [vmem:[%s164 + $0x208] sm:$0xff]
        %v485 = vld [vmem:[%s164 + $0x210] sm:$0xff]
        %v486 = vld [vmem:[%s164 + $0x218] sm:$0xff]
        %v487 = vld [vmem:[%s164 + $0x220] sm:$0xff]
        %v488 = vld [vmem:[%s164 + $0x228] sm:$0xff]
        %v489 = vld [vmem:[%s164 + $0x230] sm:$0xff]
        %v490 = vld [vmem:[%s164 + $0x238] sm:$0xff]
        %v491 = vld [vmem:[%s164 + $0x240] sm:$0xff]
        %v492 = vld [vmem:[%s164 + $0x248] sm:$0xff]
        %v493 = vld [vmem:[%s164 + $0x250] sm:$0xff]
        %v494 = vld [vmem:[%s164 + $0x258] sm:$0xff]
        %v495 = vld [vmem:[%s164 + $0x260] sm:$0xff]
        %v496 = vld [vmem:[%s164 + $0x268] sm:$0xff]
        %v497 = vld [vmem:[%s164 + $0x270] sm:$0xff]
        %v498 = vld [vmem:[%s164 + $0x278] sm:$0xff]
        %v499 = vld [vmem:[%s164 + $0x280] sm:$0xff]
        %v500 = vld [vmem:[%s164 + $0x288] sm:$0xff]
        %v501 = vld [vmem:[%s164 + $0x290] sm:$0xff]
        %v502 = vld [vmem:[%s164 + $0x298] sm:$0xff]
        %v503 = vld [vmem:[%s164 + $0x2a0] sm:$0xff]
        %v504 = vld [vmem:[%s164 + $0x2a8] sm:$0xff]
        %v505 = vld [vmem:[%s164 + $0x2b0] sm:$0xff]
        %v506 = vld [vmem:[%s164 + $0x2b8] sm:$0xff]
        %v507 = vld [vmem:[%s164 + $0x2c0] sm:$0xff]
        %v508 = vld [vmem:[%s164 + $0x2c8] sm:$0xff]
        %v509 = vld [vmem:[%s164 + $0x2d0] sm:$0xff]
        %v510 = vld [vmem:[%s164 + $0x2d8] sm:$0xff]
        %v511 = vld [vmem:[%s164 + $0x2e0] sm:$0xff]
        %v512 = vld [vmem:[%s164 + $0x2e8] sm:$0xff]
        %v513 = vld [vmem:[%s164 + $0x2f0] sm:$0xff]
        %v514 = vld [vmem:[%s164 + $0x2f8] sm:$0xff]
        %v515 = vld [vmem:[%s164 + $0x300] sm:$0xff]
        %v516 = vld [vmem:[%s164 + $0x308] sm:$0xff]
        %v517 = vld [vmem:[%s164 + $0x310] sm:$0xff]
        %v518 = vld [vmem:[%s164 + $0x318] sm:$0xff]
        %v519 = vld [vmem:[%s164 + $0x320] sm:$0xff]
        %v520 = vld [vmem:[%s164 + $0x328] sm:$0xff]
        %v521 = vld [vmem:[%s164 + $0x330] sm:$0xff]
        %v522 = vld [vmem:[%s164 + $0x338] sm:$0xff]
        %v523 = vld [vmem:[%s164 + $0x340] sm:$0xff]
        %v524 = vld [vmem:[%s164 + $0x348] sm:$0xff]
        %v525 = vld [vmem:[%s164 + $0x350] sm:$0xff]
        %v526 = vld [vmem:[%s164 + $0x358] sm:$0xff]
        %v527 = vld [vmem:[%s164 + $0x360] sm:$0xff]
        %v528 = vld [vmem:[%s164 + $0x368] sm:$0xff]
        %v529 = vld [vmem:[%s164 + $0x370] sm:$0xff]
        %v530 = vld [vmem:[%s164 + $0x378] sm:$0xff]
        %v531 = vld [vmem:[%s164 + $0x380] sm:$0xff]
        %v532 = vld [vmem:[%s164 + $0x388] sm:$0xff]
        %v533 = vld [vmem:[%s164 + $0x390] sm:$0xff]
        %v534 = vld [vmem:[%s164 + $0x398] sm:$0xff]
        %v535 = vld [vmem:[%s164 + $0x3a0] sm:$0xff]
        %v536 = vld [vmem:[%s164 + $0x3a8] sm:$0xff]
        %v537 = vld [vmem:[%s164 + $0x3b0] sm:$0xff]
        %v538 = vld [vmem:[%s164 + $0x3b8] sm:$0xff]
        %v539 = vld [vmem:[%s164 + $0x3c0] sm:$0xff]
        %v540 = vld [vmem:[%s164 + $0x3c8] sm:$0xff]
        %v541 = vld [vmem:[%s164 + $0x3d0] sm:$0xff]
        %v542 = vld [vmem:[%s164 + $0x3d8] sm:$0xff]
        %v543 = vld [vmem:[%s164 + $0x3e0] sm:$0xff]
        %v544 = vld [vmem:[%s164 + $0x3e8] sm:$0xff]
        %v545 = vld [vmem:[%s164 + $0x3f0] sm:$0xff]
        %v546 = vld [vmem:[%s164 + $0x3f8] sm:$0xff]
        %v675 = vunpack.c.l.b16 %v419
        %v676 = vunpack.c.h.b16 %v419
        %v677 = vunpack.c.l.b16 %v420
        %v678 = vunpack.c.h.b16 %v420
        %v679 = vunpack.c.l.b16 %v421
        %v680 = vunpack.c.h.b16 %v421
        %v681 = vunpack.c.l.b16 %v422
        %v682 = vunpack.c.h.b16 %v422
        %v683 = vunpack.c.l.b16 %v423
        %v684 = vunpack.c.h.b16 %v423
        %v685 = vunpack.c.l.b16 %v424
        %v686 = vunpack.c.h.b16 %v424
        %v687 = vunpack.c.l.b16 %v425
        %v688 = vunpack.c.h.b16 %v425
        %v689 = vunpack.c.l.b16 %v426
        %v690 = vunpack.c.h.b16 %v426
        %v691 = vunpack.c.l.b16 %v427
        %v692 = vunpack.c.h.b16 %v427
        %v693 = vunpack.c.l.b16 %v428
        %v694 = vunpack.c.h.b16 %v428
        %v695 = vunpack.c.l.b16 %v429
        %v696 = vunpack.c.h.b16 %v429
        %v697 = vunpack.c.l.b16 %v430
        %v698 = vunpack.c.h.b16 %v430
        %v699 = vunpack.c.l.b16 %v431
        %v700 = vunpack.c.h.b16 %v431
        %v701 = vunpack.c.l.b16 %v432
        %v702 = vunpack.c.h.b16 %v432
        %v703 = vunpack.c.l.b16 %v433
        %v704 = vunpack.c.h.b16 %v433
        %v705 = vunpack.c.l.b16 %v434
        %v706 = vunpack.c.h.b16 %v434
        %v707 = vunpack.c.l.b16 %v435
        %v708 = vunpack.c.h.b16 %v435
        %v709 = vunpack.c.l.b16 %v436
        %v710 = vunpack.c.h.b16 %v436
        %v711 = vunpack.c.l.b16 %v437
        %v712 = vunpack.c.h.b16 %v437
        %v713 = vunpack.c.l.b16 %v438
        %v714 = vunpack.c.h.b16 %v438
        %v715 = vunpack.c.l.b16 %v439
        %v716 = vunpack.c.h.b16 %v439
        %v717 = vunpack.c.l.b16 %v440
        %v718 = vunpack.c.h.b16 %v440
        %v719 = vunpack.c.l.b16 %v441
        %v720 = vunpack.c.h.b16 %v441
        %v721 = vunpack.c.l.b16 %v442
        %v722 = vunpack.c.h.b16 %v442
        %v723 = vunpack.c.l.b16 %v443
        %v724 = vunpack.c.h.b16 %v443
        %v725 = vunpack.c.l.b16 %v444
        %v726 = vunpack.c.h.b16 %v444
        %v727 = vunpack.c.l.b16 %v445
        %v728 = vunpack.c.h.b16 %v445
        %v729 = vunpack.c.l.b16 %v446
        %v730 = vunpack.c.h.b16 %v446
        %v731 = vunpack.c.l.b16 %v447
        %v732 = vunpack.c.h.b16 %v447
        %v733 = vunpack.c.l.b16 %v448
        %v734 = vunpack.c.h.b16 %v448
        %v735 = vunpack.c.l.b16 %v449
        %v736 = vunpack.c.h.b16 %v449
        %v737 = vunpack.c.l.b16 %v450
        %v738 = vunpack.c.h.b16 %v450
        %v739 = vunpack.c.l.b16 %v451
        %v740 = vunpack.c.h.b16 %v451
        %v741 = vunpack.c.l.b16 %v452
        %v742 = vunpack.c.h.b16 %v452
        %v743 = vunpack.c.l.b16 %v453
        %v744 = vunpack.c.h.b16 %v453
        %v745 = vunpack.c.l.b16 %v454
        %v746 = vunpack.c.h.b16 %v454
        %v747 = vunpack.c.l.b16 %v455
        %v748 = vunpack.c.h.b16 %v455
        %v749 = vunpack.c.l.b16 %v456
        %v750 = vunpack.c.h.b16 %v456
        %v751 = vunpack.c.l.b16 %v457
        %v752 = vunpack.c.h.b16 %v457
        %v753 = vunpack.c.l.b16 %v458
        %v754 = vunpack.c.h.b16 %v458
        %v755 = vunpack.c.l.b16 %v459
        %v756 = vunpack.c.h.b16 %v459
        %v757 = vunpack.c.l.b16 %v460
        %v758 = vunpack.c.h.b16 %v460
        %v759 = vunpack.c.l.b16 %v461
        %v760 = vunpack.c.h.b16 %v461
        %v761 = vunpack.c.l.b16 %v462
        %v762 = vunpack.c.h.b16 %v462
        %v763 = vunpack.c.l.b16 %v463
        %v764 = vunpack.c.h.b16 %v463
        %v765 = vunpack.c.l.b16 %v464
        %v766 = vunpack.c.h.b16 %v464
        %v767 = vunpack.c.l.b16 %v465
        %v768 = vunpack.c.h.b16 %v465
        %v769 = vunpack.c.l.b16 %v466
        %v770 = vunpack.c.h.b16 %v466
        %v771 = vunpack.c.l.b16 %v467
        %v772 = vunpack.c.h.b16 %v467
        %v773 = vunpack.c.l.b16 %v468
        %v774 = vunpack.c.h.b16 %v468
        %v775 = vunpack.c.l.b16 %v469
        %v776 = vunpack.c.h.b16 %v469
        %v777 = vunpack.c.l.b16 %v470
        %v778 = vunpack.c.h.b16 %v470
        %v779 = vunpack.c.l.b16 %v471
        %v780 = vunpack.c.h.b16 %v471
        %v781 = vunpack.c.l.b16 %v472
        %v782 = vunpack.c.h.b16 %v472
        %v783 = vunpack.c.l.b16 %v473
        %v784 = vunpack.c.h.b16 %v473
        %v785 = vunpack.c.l.b16 %v474
        %v786 = vunpack.c.h.b16 %v474
        %v787 = vunpack.c.l.b16 %v475
        %v788 = vunpack.c.h.b16 %v475
        %v789 = vunpack.c.l.b16 %v476
        %v790 = vunpack.c.h.b16 %v476
        %v791 = vunpack.c.l.b16 %v477
        %v792 = vunpack.c.h.b16 %v477
        %v793 = vunpack.c.l.b16 %v478
        %v794 = vunpack.c.h.b16 %v478
        %v795 = vunpack.c.l.b16 %v479
        %v796 = vunpack.c.h.b16 %v479
        %v797 = vunpack.c.l.b16 %v480
        %v798 = vunpack.c.h.b16 %v480
        %v799 = vunpack.c.l.b16 %v481
        %v800 = vunpack.c.h.b16 %v481
        %v801 = vunpack.c.l.b16 %v482
        %v802 = vunpack.c.h.b16 %v482
        %v803 = vunpack.c.l.b16 %v483
        %v804 = vunpack.c.h.b16 %v483
        %v805 = vunpack.c.l.b16 %v484
        %v806 = vunpack.c.h.b16 %v484
        %v807 = vunpack.c.l.b16 %v485
        %v808 = vunpack.c.h.b16 %v485
        %v809 = vunpack.c.l.b16 %v486
        %v810 = vunpack.c.h.b16 %v486
        %v811 = vunpack.c.l.b16 %v487
        %v812 = vunpack.c.h.b16 %v487
        %v813 = vunpack.c.l.b16 %v488
        %v814 = vunpack.c.h.b16 %v488
        %v815 = vunpack.c.l.b16 %v489
        %v816 = vunpack.c.h.b16 %v489
        %v817 = vunpack.c.l.b16 %v490
        %v818 = vunpack.c.h.b16 %v490
        %v819 = vunpack.c.l.b16 %v491
        %v820 = vunpack.c.h.b16 %v491
        %v821 = vunpack.c.l.b16 %v492
        %v822 = vunpack.c.h.b16 %v492
        %v823 = vunpack.c.l.b16 %v493
        %v824 = vunpack.c.h.b16 %v493
        %v825 = vunpack.c.l.b16 %v494
        %v826 = vunpack.c.h.b16 %v494
        %v827 = vunpack.c.l.b16 %v495
        %v828 = vunpack.c.h.b16 %v495
        %v829 = vunpack.c.l.b16 %v496
        %v830 = vunpack.c.h.b16 %v496
        %v831 = vunpack.c.l.b16 %v497
        %v832 = vunpack.c.h.b16 %v497
        %v833 = vunpack.c.l.b16 %v498
        %v834 = vunpack.c.h.b16 %v498
        %v835 = vunpack.c.l.b16 %v499
        %v836 = vunpack.c.h.b16 %v499
        %v837 = vunpack.c.l.b16 %v500
        %v838 = vunpack.c.h.b16 %v500
        %v839 = vunpack.c.l.b16 %v501
        %v840 = vunpack.c.h.b16 %v501
        %v841 = vunpack.c.l.b16 %v502
        %v842 = vunpack.c.h.b16 %v502
        %v843 = vunpack.c.l.b16 %v503
        %v844 = vunpack.c.h.b16 %v503
        %v845 = vunpack.c.l.b16 %v504
        %v846 = vunpack.c.h.b16 %v504
        %v847 = vunpack.c.l.b16 %v505
        %v848 = vunpack.c.h.b16 %v505
        %v849 = vunpack.c.l.b16 %v506
        %v850 = vunpack.c.h.b16 %v506
        %v851 = vunpack.c.l.b16 %v507
        %v852 = vunpack.c.h.b16 %v507
        %v853 = vunpack.c.l.b16 %v508
        %v854 = vunpack.c.h.b16 %v508
        %v855 = vunpack.c.l.b16 %v509
        %v856 = vunpack.c.h.b16 %v509
        %v857 = vunpack.c.l.b16 %v510
        %v858 = vunpack.c.h.b16 %v510
        %v859 = vunpack.c.l.b16 %v511
        %v860 = vunpack.c.h.b16 %v511
        %v861 = vunpack.c.l.b16 %v512
        %v862 = vunpack.c.h.b16 %v512
        %v863 = vunpack.c.l.b16 %v513
        %v864 = vunpack.c.h.b16 %v513
        %v865 = vunpack.c.l.b16 %v514
        %v866 = vunpack.c.h.b16 %v514
        %v867 = vunpack.c.l.b16 %v515
        %v868 = vunpack.c.h.b16 %v515
        %v869 = vunpack.c.l.b16 %v516
        %v870 = vunpack.c.h.b16 %v516
        %v871 = vunpack.c.l.b16 %v517
        %v872 = vunpack.c.h.b16 %v517
        %v873 = vunpack.c.l.b16 %v518
        %v874 = vunpack.c.h.b16 %v518
        %v875 = vunpack.c.l.b16 %v519
        %v876 = vunpack.c.h.b16 %v519
        %v877 = vunpack.c.l.b16 %v520
        %v878 = vunpack.c.h.b16 %v520
        %v879 = vunpack.c.l.b16 %v521
        %v880 = vunpack.c.h.b16 %v521
        %v881 = vunpack.c.l.b16 %v522
        %v882 = vunpack.c.h.b16 %v522
        %v883 = vunpack.c.l.b16 %v523
        %v884 = vunpack.c.h.b16 %v523
        %v885 = vunpack.c.l.b16 %v524
        %v886 = vunpack.c.h.b16 %v524
        %v887 = vunpack.c.l.b16 %v525
        %v888 = vunpack.c.h.b16 %v525
        %v889 = vunpack.c.l.b16 %v526
        %v890 = vunpack.c.h.b16 %v526
        %v891 = vunpack.c.l.b16 %v527
        %v892 = vunpack.c.h.b16 %v527
        %v893 = vunpack.c.l.b16 %v528
        %v894 = vunpack.c.h.b16 %v528
        %v895 = vunpack.c.l.b16 %v529
        %v896 = vunpack.c.h.b16 %v529
        %v897 = vunpack.c.l.b16 %v530
        %v898 = vunpack.c.h.b16 %v530
        %v899 = vunpack.c.l.b16 %v531
        %v900 = vunpack.c.h.b16 %v531
        %v901 = vunpack.c.l.b16 %v532
        %v902 = vunpack.c.h.b16 %v532
        %v903 = vunpack.c.l.b16 %v533
        %v904 = vunpack.c.h.b16 %v533
        %v905 = vunpack.c.l.b16 %v534
        %v906 = vunpack.c.h.b16 %v534
        %v907 = vunpack.c.l.b16 %v535
        %v908 = vunpack.c.h.b16 %v535
        %v909 = vunpack.c.l.b16 %v536
        %v910 = vunpack.c.h.b16 %v536
        %v911 = vunpack.c.l.b16 %v537
        %v912 = vunpack.c.h.b16 %v537
        %v913 = vunpack.c.l.b16 %v538
        %v914 = vunpack.c.h.b16 %v538
        %v915 = vunpack.c.l.b16 %v539
        %v916 = vunpack.c.h.b16 %v539
        %v917 = vunpack.c.l.b16 %v540
        %v918 = vunpack.c.h.b16 %v540
        %v919 = vunpack.c.l.b16 %v541
        %v920 = vunpack.c.h.b16 %v541
        %v921 = vunpack.c.l.b16 %v542
        %v922 = vunpack.c.h.b16 %v542
        %v923 = vunpack.c.l.b16 %v543
        %v924 = vunpack.c.h.b16 %v543
        %v925 = vunpack.c.l.b16 %v544
        %v926 = vunpack.c.h.b16 %v544
        %v927 = vunpack.c.l.b16 %v545
        %v928 = vunpack.c.h.b16 %v545
        %v929 = vunpack.c.l.b16 %v546
        %v930 = vunpack.c.h.b16 %v546
        %v931 = vpack.c.b16 %v679, %v675
        %v932 = vpack.c.b16 %v680, %v676
        %v933 = vpack.c.b16 %v681, %v677
        %v934 = vpack.c.b16 %v682, %v678
        %v935 = vpack.c.b16 %v687, %v683
        %v936 = vpack.c.b16 %v688, %v684
        %v937 = vpack.c.b16 %v689, %v685
        %v938 = vpack.c.b16 %v690, %v686
        %v939 = vpack.c.b16 %v695, %v691
        %v940 = vpack.c.b16 %v696, %v692
        %v941 = vpack.c.b16 %v697, %v693
        %v942 = vpack.c.b16 %v698, %v694
        %v943 = vpack.c.b16 %v703, %v699
        %v944 = vpack.c.b16 %v704, %v700
        %v945 = vpack.c.b16 %v705, %v701
        %v946 = vpack.c.b16 %v706, %v702
        %v947 = vpack.c.b16 %v711, %v707
        %v948 = vpack.c.b16 %v712, %v708
        %v949 = vpack.c.b16 %v713, %v709
        %v950 = vpack.c.b16 %v714, %v710
        %v951 = vpack.c.b16 %v719, %v715
        %v952 = vpack.c.b16 %v720, %v716
        %v953 = vpack.c.b16 %v721, %v717
        %v954 = vpack.c.b16 %v722, %v718
        %v955 = vpack.c.b16 %v727, %v723
        %v956 = vpack.c.b16 %v728, %v724
        %v957 = vpack.c.b16 %v729, %v725
        %v958 = vpack.c.b16 %v730, %v726
        %v959 = vpack.c.b16 %v735, %v731
        %v960 = vpack.c.b16 %v736, %v732
        %v961 = vpack.c.b16 %v737, %v733
        %v962 = vpack.c.b16 %v738, %v734
        %v963 = vpack.c.b16 %v743, %v739
        %v964 = vpack.c.b16 %v744, %v740
        %v965 = vpack.c.b16 %v745, %v741
        %v966 = vpack.c.b16 %v746, %v742
        %v967 = vpack.c.b16 %v751, %v747
        %v968 = vpack.c.b16 %v752, %v748
        %v969 = vpack.c.b16 %v753, %v749
        %v970 = vpack.c.b16 %v754, %v750
        %v971 = vpack.c.b16 %v759, %v755
        %v972 = vpack.c.b16 %v760, %v756
        %v973 = vpack.c.b16 %v761, %v757
        %v974 = vpack.c.b16 %v762, %v758
        %v975 = vpack.c.b16 %v767, %v763
        %v976 = vpack.c.b16 %v768, %v764
        %v977 = vpack.c.b16 %v769, %v765
        %v978 = vpack.c.b16 %v770, %v766
        %v979 = vpack.c.b16 %v775, %v771
        %v980 = vpack.c.b16 %v776, %v772
        %v981 = vpack.c.b16 %v777, %v773
        %v982 = vpack.c.b16 %v778, %v774
        %v983 = vpack.c.b16 %v783, %v779
        %v984 = vpack.c.b16 %v784, %v780
        %v985 = vpack.c.b16 %v785, %v781
        %v986 = vpack.c.b16 %v786, %v782
        %v987 = vpack.c.b16 %v791, %v787
        %v988 = vpack.c.b16 %v792, %v788
        %v989 = vpack.c.b16 %v793, %v789
        %v990 = vpack.c.b16 %v794, %v790
        %v991 = vpack.c.b16 %v799, %v795
        %v992 = vpack.c.b16 %v800, %v796
        %v993 = vpack.c.b16 %v801, %v797
        %v994 = vpack.c.b16 %v802, %v798
        %v995 = vpack.c.b16 %v807, %v803
        %v996 = vpack.c.b16 %v808, %v804
        %v997 = vpack.c.b16 %v809, %v805
        %v998 = vpack.c.b16 %v810, %v806
        %v999 = vpack.c.b16 %v815, %v811
        %v1000 = vpack.c.b16 %v816, %v812
        %v1001 = vpack.c.b16 %v817, %v813
        %v1002 = vpack.c.b16 %v818, %v814
        %v1003 = vpack.c.b16 %v823, %v819
        %v1004 = vpack.c.b16 %v824, %v820
        %v1005 = vpack.c.b16 %v825, %v821
        %v1006 = vpack.c.b16 %v826, %v822
        %v1007 = vpack.c.b16 %v831, %v827
        %v1008 = vpack.c.b16 %v832, %v828
        %v1009 = vpack.c.b16 %v833, %v829
        %v1010 = vpack.c.b16 %v834, %v830
        %v1011 = vpack.c.b16 %v839, %v835
        %v1012 = vpack.c.b16 %v840, %v836
        %v1013 = vpack.c.b16 %v841, %v837
        %v1014 = vpack.c.b16 %v842, %v838
        %v1015 = vpack.c.b16 %v847, %v843
        %v1016 = vpack.c.b16 %v848, %v844
        %v1017 = vpack.c.b16 %v849, %v845
        %v1018 = vpack.c.b16 %v850, %v846
        %v1019 = vpack.c.b16 %v855, %v851
        %v1020 = vpack.c.b16 %v856, %v852
        %v1021 = vpack.c.b16 %v857, %v853
        %v1022 = vpack.c.b16 %v858, %v854
        %v1023 = vpack.c.b16 %v863, %v859
        %v1024 = vpack.c.b16 %v864, %v860
        %v1025 = vpack.c.b16 %v865, %v861
        %v1026 = vpack.c.b16 %v866, %v862
        %v1027 = vpack.c.b16 %v871, %v867
        %v1028 = vpack.c.b16 %v872, %v868
        %v1029 = vpack.c.b16 %v873, %v869
        %v1030 = vpack.c.b16 %v874, %v870
        %v1031 = vpack.c.b16 %v879, %v875
        %v1032 = vpack.c.b16 %v880, %v876
        %v1033 = vpack.c.b16 %v881, %v877
        %v1034 = vpack.c.b16 %v882, %v878
        %v1035 = vpack.c.b16 %v887, %v883
        %v1036 = vpack.c.b16 %v888, %v884
        %v1037 = vpack.c.b16 %v889, %v885
        %v1038 = vpack.c.b16 %v890, %v886
        %v1039 = vpack.c.b16 %v895, %v891
        %v1040 = vpack.c.b16 %v896, %v892
        %v1041 = vpack.c.b16 %v897, %v893
        %v1042 = vpack.c.b16 %v898, %v894
        %v1043 = vpack.c.b16 %v903, %v899
        %v1044 = vpack.c.b16 %v904, %v900
        %v1045 = vpack.c.b16 %v905, %v901
        %v1046 = vpack.c.b16 %v906, %v902
        %v1047 = vpack.c.b16 %v911, %v907
        %v1048 = vpack.c.b16 %v912, %v908
        %v1049 = vpack.c.b16 %v913, %v909
        %v1050 = vpack.c.b16 %v914, %v910
        %v1051 = vpack.c.b16 %v919, %v915
        %v1052 = vpack.c.b16 %v920, %v916
        %v1053 = vpack.c.b16 %v921, %v917
        %v1054 = vpack.c.b16 %v922, %v918
        %v1055 = vpack.c.b16 %v927, %v923
        %v1056 = vpack.c.b16 %v928, %v924
        %v1057 = vpack.c.b16 %v929, %v925
        %v1058 = vpack.c.b16 %v930, %v926
        %1187 = vmatprep.subr.bf16.mxu0 0
        %1188 = vmatpush1.bf16.msra.mxu0 %v394
        %1189 = vmatprep.subr.bf16.mxu0 0
        %1190 = vmatpush1.bf16.msra.mxu0 %v393
        %1191 = vmatprep.subr.bf16.mxu0 0
        %1192 = vmatpush1.bf16.msra.mxu0 %v392
        %1193 = vmatprep.subr.bf16.mxu0 0
        %1194 = vmatpush1.bf16.msra.mxu0 %v391
        %1195 = vmatprep.subr.bf16.mxu0 0
        %1196 = vmatpush1.bf16.msra.mxu0 %v390
        %1197 = vmatprep.subr.bf16.mxu0 0
        %1198 = vmatpush1.bf16.msra.mxu0 %v389
        %1199 = vmatprep.subr.bf16.mxu0 0
        %1200 = vmatpush1.bf16.msra.mxu0 %v388
        %1201 = vmatprep.subr.bf16.mxu0 0
        %1202 = vmatpush1.bf16.msra.mxu0 %v387
        %1203 = vmatprep.subr.bf16.mxu0 0
        %1204 = vmatpush2.bf16.msra.mxu0 %v402
        %1205 = vmatprep.subr.bf16.mxu0 0
        %1206 = vmatpush2.bf16.msra.mxu0 %v401
        %1207 = vmatprep.subr.bf16.mxu0 0
        %1208 = vmatpush2.bf16.msra.mxu0 %v400
        %1209 = vmatprep.subr.bf16.mxu0 0
        %1210 = vmatpush2.bf16.msra.mxu0 %v399
        %1211 = vmatprep.subr.bf16.mxu0 0
        %1212 = vmatpush2.bf16.msra.mxu0 %v398
        %1213 = vmatprep.subr.bf16.mxu0 0
        %1214 = vmatpush2.bf16.msra.mxu0 %v397
        %1215 = vmatprep.subr.bf16.mxu0 0
        %1216 = vmatpush2.bf16.msra.mxu0 %v396
        %1217 = vmatprep.subr.bf16.mxu0 0
        %1218 = vmatpush2.bf16.msra.mxu0 %v395
        %1219 = vmatprep.mubr.bf16.mxu0 %v932
        %1220 = vmatmul.mubr.bf16.gmra.mxu0 %v931
        %v1221 = vpop.f32.mrf.mxu0
        %v1222 = vadd.f32 0.0, %v1221
        %v1223 = vpop.f32.mrf.mxu0
        %v1224 = vpop.f32.mrf.mxu0
        %v1225 = vadd.f32 0.0, %v1224
        %v1226 = vpop.f32.mrf.mxu0
        %1227 = vmatprep.mubr.bf16.mxu0 %v936
        %1228 = vmatmul.mubr.bf16.gmra.mxu0 %v935
        %v1229 = vpop.f32.mrf.mxu0
        %v1230 = vadd.f32 0.0, %v1229
        %v1231 = vpop.f32.mrf.mxu0
        %v1232 = vpop.f32.mrf.mxu0
        %v1233 = vadd.f32 0.0, %v1232
        %v1234 = vpop.f32.mrf.mxu0
        %1235 = vmatprep.mubr.bf16.mxu0 %v940
        %1236 = vmatmul.mubr.bf16.gmra.mxu0 %v939
        %v1237 = vpop.f32.mrf.mxu0
        %v1238 = vadd.f32 0.0, %v1237
        %v1239 = vpop.f32.mrf.mxu0
        %v1240 = vpop.f32.mrf.mxu0
        %v1241 = vadd.f32 0.0, %v1240
        %v1242 = vpop.f32.mrf.mxu0
        %1243 = vmatprep.mubr.bf16.mxu0 %v944
        %1244 = vmatmul.mubr.bf16.gmra.mxu0 %v943
        %v1245 = vpop.f32.mrf.mxu0
        %v1246 = vadd.f32 0.0, %v1245
        %v1247 = vpop.f32.mrf.mxu0
        %v1248 = vpop.f32.mrf.mxu0
        %v1249 = vadd.f32 0.0, %v1248
        %v1250 = vpop.f32.mrf.mxu0
        %1251 = vmatprep.mubr.bf16.mxu0 %v948
        %1252 = vmatmul.mubr.bf16.gmra.mxu0 %v947
        %v1253 = vpop.f32.mrf.mxu0
        %v1254 = vadd.f32 0.0, %v1253
        %v1255 = vpop.f32.mrf.mxu0
        %v1256 = vpop.f32.mrf.mxu0
        %v1257 = vadd.f32 0.0, %v1256
        %v1258 = vpop.f32.mrf.mxu0
        %1259 = vmatprep.mubr.bf16.mxu0 %v952
        %1260 = vmatmul.mubr.bf16.gmra.mxu0 %v951
        %v1261 = vpop.f32.mrf.mxu0
        %v1262 = vadd.f32 0.0, %v1261
        %v1263 = vpop.f32.mrf.mxu0
        %v1264 = vpop.f32.mrf.mxu0
        %v1265 = vadd.f32 0.0, %v1264
        %v1266 = vpop.f32.mrf.mxu0
        %1267 = vmatprep.mubr.bf16.mxu0 %v956
        %1268 = vmatmul.mubr.bf16.gmra.mxu0 %v955
        %v1269 = vpop.f32.mrf.mxu0
        %v1270 = vadd.f32 0.0, %v1269
        %v1271 = vpop.f32.mrf.mxu0
        %v1272 = vpop.f32.mrf.mxu0
        %v1273 = vadd.f32 0.0, %v1272
        %v1274 = vpop.f32.mrf.mxu0
        %1275 = vmatprep.mubr.bf16.mxu0 %v960
        %1276 = vmatmul.mubr.bf16.gmra.mxu0 %v959
        %v1277 = vpop.f32.mrf.mxu0
        %v1278 = vadd.f32 0.0, %v1277
        %v1279 = vpop.f32.mrf.mxu0
        %v1280 = vpop.f32.mrf.mxu0
        %v1281 = vadd.f32 0.0, %v1280
        %v1282 = vpop.f32.mrf.mxu0
        %1283 = vmatprep.mubr.bf16.mxu0 %v964
        %1284 = vmatmul.mubr.bf16.gmra.mxu0 %v963
        %v1285 = vpop.f32.mrf.mxu0
        %v1286 = vadd.f32 0.0, %v1285
        %v1287 = vpop.f32.mrf.mxu0
        %v1288 = vpop.f32.mrf.mxu0
        %v1289 = vadd.f32 0.0, %v1288
        %v1290 = vpop.f32.mrf.mxu0
        %1291 = vmatprep.mubr.bf16.mxu0 %v968
        %1292 = vmatmul.mubr.bf16.gmra.mxu0 %v967
        %v1293 = vpop.f32.mrf.mxu0
        %v1294 = vadd.f32 0.0, %v1293
        %v1295 = vpop.f32.mrf.mxu0
        %v1296 = vpop.f32.mrf.mxu0
        %v1297 = vadd.f32 0.0, %v1296
        %v1298 = vpop.f32.mrf.mxu0
        %1299 = vmatprep.mubr.bf16.mxu0 %v972
        %1300 = vmatmul.mubr.bf16.gmra.mxu0 %v971
        %v1301 = vpop.f32.mrf.mxu0
        %v1302 = vadd.f32 0.0, %v1301
        %v1303 = vpop.f32.mrf.mxu0
        %v1304 = vpop.f32.mrf.mxu0
        %v1305 = vadd.f32 0.0, %v1304
        %v1306 = vpop.f32.mrf.mxu0
        %1307 = vmatprep.mubr.bf16.mxu0 %v976
        %1308 = vmatmul.mubr.bf16.gmra.mxu0 %v975
        %v1309 = vpop.f32.mrf.mxu0
        %v1310 = vadd.f32 0.0, %v1309
        %v1311 = vpop.f32.mrf.mxu0
        %v1312 = vpop.f32.mrf.mxu0
        %v1313 = vadd.f32 0.0, %v1312
        %v1314 = vpop.f32.mrf.mxu0
        %1315 = vmatprep.mubr.bf16.mxu0 %v980
        %1316 = vmatmul.mubr.bf16.gmra.mxu0 %v979
        %v1317 = vpop.f32.mrf.mxu0
        %v1318 = vadd.f32 0.0, %v1317
        %v1319 = vpop.f32.mrf.mxu0
        %v1320 = vpop.f32.mrf.mxu0
        %v1321 = vadd.f32 0.0, %v1320
        %v1322 = vpop.f32.mrf.mxu0
        %1323 = vmatprep.mubr.bf16.mxu0 %v984
        %1324 = vmatmul.mubr.bf16.gmra.mxu0 %v983
        %v1325 = vpop.f32.mrf.mxu0
        %v1326 = vadd.f32 0.0, %v1325
        %v1327 = vpop.f32.mrf.mxu0
        %v1328 = vpop.f32.mrf.mxu0
        %v1329 = vadd.f32 0.0, %v1328
        %v1330 = vpop.f32.mrf.mxu0
        %1331 = vmatprep.mubr.bf16.mxu0 %v988
        %1332 = vmatmul.mubr.bf16.gmra.mxu0 %v987
        %v1333 = vpop.f32.mrf.mxu0
        %v1334 = vadd.f32 0.0, %v1333
        %v1335 = vpop.f32.mrf.mxu0
        %v1336 = vpop.f32.mrf.mxu0
        %v1337 = vadd.f32 0.0, %v1336
        %v1338 = vpop.f32.mrf.mxu0
        %1339 = vmatprep.mubr.bf16.mxu0 %v992
        %1340 = vmatmul.mubr.bf16.gmra.mxu0 %v991
        %v1341 = vpop.f32.mrf.mxu0
        %v1342 = vadd.f32 0.0, %v1341
        %v1343 = vpop.f32.mrf.mxu0
        %v1344 = vpop.f32.mrf.mxu0
        %v1345 = vadd.f32 0.0, %v1344
        %v1346 = vpop.f32.mrf.mxu0
        %1347 = vmatprep.mubr.bf16.mxu0 %v996
        %1348 = vmatmul.mubr.bf16.gmra.mxu0 %v995
        %v1349 = vpop.f32.mrf.mxu0
        %v1350 = vadd.f32 0.0, %v1349
        %v1351 = vpop.f32.mrf.mxu0
        %v1352 = vpop.f32.mrf.mxu0
        %v1353 = vadd.f32 0.0, %v1352
        %v1354 = vpop.f32.mrf.mxu0
        %1355 = vmatprep.mubr.bf16.mxu0 %v1000
        %1356 = vmatmul.mubr.bf16.gmra.mxu0 %v999
        %v1357 = vpop.f32.mrf.mxu0
        %v1358 = vadd.f32 0.0, %v1357
        %v1359 = vpop.f32.mrf.mxu0
        %v1360 = vpop.f32.mrf.mxu0
        %v1361 = vadd.f32 0.0, %v1360
        %v1362 = vpop.f32.mrf.mxu0
        %1363 = vmatprep.mubr.bf16.mxu0 %v1004
        %1364 = vmatmul.mubr.bf16.gmra.mxu0 %v1003
        %v1365 = vpop.f32.mrf.mxu0
        %v1366 = vadd.f32 0.0, %v1365
        %v1367 = vpop.f32.mrf.mxu0
        %v1368 = vpop.f32.mrf.mxu0
        %v1369 = vadd.f32 0.0, %v1368
        %v1370 = vpop.f32.mrf.mxu0
        %1371 = vmatprep.mubr.bf16.mxu0 %v1008
        %1372 = vmatmul.mubr.bf16.gmra.mxu0 %v1007
        %v1373 = vpop.f32.mrf.mxu0
        %v1374 = vadd.f32 0.0, %v1373
        %v1375 = vpop.f32.mrf.mxu0
        %v1376 = vpop.f32.mrf.mxu0
        %v1377 = vadd.f32 0.0, %v1376
        %v1378 = vpop.f32.mrf.mxu0
        %1379 = vmatprep.mubr.bf16.mxu0 %v1012
        %1380 = vmatmul.mubr.bf16.gmra.mxu0 %v1011
        %v1381 = vpop.f32.mrf.mxu0
        %v1382 = vadd.f32 0.0, %v1381
        %v1383 = vpop.f32.mrf.mxu0
        %v1384 = vpop.f32.mrf.mxu0
        %v1385 = vadd.f32 0.0, %v1384
        %v1386 = vpop.f32.mrf.mxu0
        %1387 = vmatprep.mubr.bf16.mxu0 %v1016
        %1388 = vmatmul.mubr.bf16.gmra.mxu0 %v1015
        %v1389 = vpop.f32.mrf.mxu0
        %v1390 = vadd.f32 0.0, %v1389
        %v1391 = vpop.f32.mrf.mxu0
        %v1392 = vpop.f32.mrf.mxu0
        %v1393 = vadd.f32 0.0, %v1392
        %v1394 = vpop.f32.mrf.mxu0
        %1395 = vmatprep.mubr.bf16.mxu0 %v1020
        %1396 = vmatmul.mubr.bf16.gmra.mxu0 %v1019
        %v1397 = vpop.f32.mrf.mxu0
        %v1398 = vadd.f32 0.0, %v1397
        %v1399 = vpop.f32.mrf.mxu0
        %v1400 = vpop.f32.mrf.mxu0
        %v1401 = vadd.f32 0.0, %v1400
        %v1402 = vpop.f32.mrf.mxu0
        %1403 = vmatprep.mubr.bf16.mxu0 %v1024
        %1404 = vmatmul.mubr.bf16.gmra.mxu0 %v1023
        %v1405 = vpop.f32.mrf.mxu0
        %v1406 = vadd.f32 0.0, %v1405
        %v1407 = vpop.f32.mrf.mxu0
        %v1408 = vpop.f32.mrf.mxu0
        %v1409 = vadd.f32 0.0, %v1408
        %v1410 = vpop.f32.mrf.mxu0
        %1411 = vmatprep.mubr.bf16.mxu0 %v1028
        %1412 = vmatmul.mubr.bf16.gmra.mxu0 %v1027
        %v1413 = vpop.f32.mrf.mxu0
        %v1414 = vadd.f32 0.0, %v1413
        %v1415 = vpop.f32.mrf.mxu0
        %v1416 = vpop.f32.mrf.mxu0
        %v1417 = vadd.f32 0.0, %v1416
        %v1418 = vpop.f32.mrf.mxu0
        %1419 = vmatprep.mubr.bf16.mxu0 %v1032
        %1420 = vmatmul.mubr.bf16.gmra.mxu0 %v1031
        %v1421 = vpop.f32.mrf.mxu0
        %v1422 = vadd.f32 0.0, %v1421
        %v1423 = vpop.f32.mrf.mxu0
        %v1424 = vpop.f32.mrf.mxu0
        %v1425 = vadd.f32 0.0, %v1424
        %v1426 = vpop.f32.mrf.mxu0
        %1427 = vmatprep.mubr.bf16.mxu0 %v1036
        %1428 = vmatmul.mubr.bf16.gmra.mxu0 %v1035
        %v1429 = vpop.f32.mrf.mxu0
        %v1430 = vadd.f32 0.0, %v1429
        %v1431 = vpop.f32.mrf.mxu0
        %v1432 = vpop.f32.mrf.mxu0
        %v1433 = vadd.f32 0.0, %v1432
        %v1434 = vpop.f32.mrf.mxu0
        %1435 = vmatprep.mubr.bf16.mxu0 %v1040
        %1436 = vmatmul.mubr.bf16.gmra.mxu0 %v1039
        %v1437 = vpop.f32.mrf.mxu0
        %v1438 = vadd.f32 0.0, %v1437
        %v1439 = vpop.f32.mrf.mxu0
        %v1440 = vpop.f32.mrf.mxu0
        %v1441 = vadd.f32 0.0, %v1440
        %v1442 = vpop.f32.mrf.mxu0
        %1443 = vmatprep.mubr.bf16.mxu0 %v1044
        %1444 = vmatmul.mubr.bf16.gmra.mxu0 %v1043
        %v1445 = vpop.f32.mrf.mxu0
        %v1446 = vadd.f32 0.0, %v1445
        %v1447 = vpop.f32.mrf.mxu0
        %v1448 = vpop.f32.mrf.mxu0
        %v1449 = vadd.f32 0.0, %v1448
        %v1450 = vpop.f32.mrf.mxu0
        %1451 = vmatprep.mubr.bf16.mxu0 %v1048
        %1452 = vmatmul.mubr.bf16.gmra.mxu0 %v1047
        %v1453 = vpop.f32.mrf.mxu0
        %v1454 = vadd.f32 0.0, %v1453
        %v1455 = vpop.f32.mrf.mxu0
        %v1456 = vpop.f32.mrf.mxu0
        %v1457 = vadd.f32 0.0, %v1456
        %v1458 = vpop.f32.mrf.mxu0
        %1459 = vmatprep.mubr.bf16.mxu0 %v1052
        %1460 = vmatmul.mubr.bf16.gmra.mxu0 %v1051
        %v1461 = vpop.f32.mrf.mxu0
        %v1462 = vadd.f32 0.0, %v1461
        %v1463 = vpop.f32.mrf.mxu0
        %v1464 = vpop.f32.mrf.mxu0
        %v1465 = vadd.f32 0.0, %v1464
        %v1466 = vpop.f32.mrf.mxu0
        %1467 = vmatprep.mubr.bf16.mxu0 %v1056
        %1468 = vmatmul.mubr.bf16.gmra.mxu0 %v1055
        %v1469 = vpop.f32.mrf.mxu0
        %v1470 = vadd.f32 0.0, %v1469
        %v1471 = vpop.f32.mrf.mxu0
        %v1472 = vpop.f32.mrf.mxu0
        %v1473 = vadd.f32 0.0, %v1472
        %v1474 = vpop.f32.mrf.mxu0
        %1475 = vdwg.mxu0
        %1476 = vmatprep.subr.bf16.mxu0 0
        %1477 = vmatpush1.bf16.msra.mxu0 %v410
        %1478 = vmatprep.subr.bf16.mxu0 0
        %1479 = vmatpush1.bf16.msra.mxu0 %v409
        %1480 = vmatprep.subr.bf16.mxu0 0
        %1481 = vmatpush1.bf16.msra.mxu0 %v408
        %1482 = vmatprep.subr.bf16.mxu0 0
        %1483 = vmatpush1.bf16.msra.mxu0 %v407
        %1484 = vmatprep.subr.bf16.mxu0 0
        %1485 = vmatpush1.bf16.msra.mxu0 %v406
        %1486 = vmatprep.subr.bf16.mxu0 0
        %1487 = vmatpush1.bf16.msra.mxu0 %v405
        %1488 = vmatprep.subr.bf16.mxu0 0
        %1489 = vmatpush1.bf16.msra.mxu0 %v404
        %1490 = vmatprep.subr.bf16.mxu0 0
        %1491 = vmatpush1.bf16.msra.mxu0 %v403
        %1492 = vmatprep.subr.bf16.mxu0 0
        %1493 = vmatpush2.bf16.msra.mxu0 %v418
        %1494 = vmatprep.subr.bf16.mxu0 0
        %1495 = vmatpush2.bf16.msra.mxu0 %v417
        %1496 = vmatprep.subr.bf16.mxu0 0
        %1497 = vmatpush2.bf16.msra.mxu0 %v416
        %1498 = vmatprep.subr.bf16.mxu0 0
        %1499 = vmatpush2.bf16.msra.mxu0 %v415
        %1500 = vmatprep.subr.bf16.mxu0 0
        %1501 = vmatpush2.bf16.msra.mxu0 %v414
        %1502 = vmatprep.subr.bf16.mxu0 0
        %1503 = vmatpush2.bf16.msra.mxu0 %v413
        %1504 = vmatprep.subr.bf16.mxu0 0
        %1505 = vmatpush2.bf16.msra.mxu0 %v412
        %1506 = vmatprep.subr.bf16.mxu0 0
        %1507 = vmatpush2.bf16.msra.mxu0 %v411
        %1508 = vmatprep.mubr.bf16.mxu0 %v934
        %1509 = vmatmul.mubr.bf16.gmra.mxu0 %v933
        %v1510 = vpop.f32.mrf.mxu0
        %v1511 = vadd.f32 %v1222, %v1510
        %v1512 = vpop.f32.mrf.mxu0
        %v1513 = vpop.f32.mrf.mxu0
        %v1514 = vadd.f32 %v1225, %v1513
        %v1515 = vpop.f32.mrf.mxu0
        %1516 = vmatprep.mubr.bf16.mxu0 %v938
        %1517 = vmatmul.mubr.bf16.gmra.mxu0 %v937
        %v1518 = vpop.f32.mrf.mxu0
        %v1519 = vadd.f32 %v1230, %v1518
        %v1520 = vpop.f32.mrf.mxu0
        %v1521 = vpop.f32.mrf.mxu0
        %v1522 = vadd.f32 %v1233, %v1521
        %v1523 = vpop.f32.mrf.mxu0
        %1524 = vmatprep.mubr.bf16.mxu0 %v942
        %1525 = vmatmul.mubr.bf16.gmra.mxu0 %v941
        %v1526 = vpop.f32.mrf.mxu0
        %v1527 = vadd.f32 %v1238, %v1526
        %v1528 = vpop.f32.mrf.mxu0
        %v1529 = vpop.f32.mrf.mxu0
        %v1530 = vadd.f32 %v1241, %v1529
        %v1531 = vpop.f32.mrf.mxu0
        %1532 = vmatprep.mubr.bf16.mxu0 %v946
        %1533 = vmatmul.mubr.bf16.gmra.mxu0 %v945
        %v1534 = vpop.f32.mrf.mxu0
        %v1535 = vadd.f32 %v1246, %v1534
        %v1536 = vpop.f32.mrf.mxu0
        %v1537 = vpop.f32.mrf.mxu0
        %v1538 = vadd.f32 %v1249, %v1537
        %v1539 = vpop.f32.mrf.mxu0
        %1540 = vmatprep.mubr.bf16.mxu0 %v950
        %1541 = vmatmul.mubr.bf16.gmra.mxu0 %v949
        %v1542 = vpop.f32.mrf.mxu0
        %v1543 = vadd.f32 %v1254, %v1542
        %v1544 = vpop.f32.mrf.mxu0
        %v1545 = vpop.f32.mrf.mxu0
        %v1546 = vadd.f32 %v1257, %v1545
        %v1547 = vpop.f32.mrf.mxu0
        %1548 = vmatprep.mubr.bf16.mxu0 %v954
        %1549 = vmatmul.mubr.bf16.gmra.mxu0 %v953
        %v1550 = vpop.f32.mrf.mxu0
        %v1551 = vadd.f32 %v1262, %v1550
        %v1552 = vpop.f32.mrf.mxu0
        %v1553 = vpop.f32.mrf.mxu0
        %v1554 = vadd.f32 %v1265, %v1553
        %v1555 = vpop.f32.mrf.mxu0
        %1556 = vmatprep.mubr.bf16.mxu0 %v958
        %1557 = vmatmul.mubr.bf16.gmra.mxu0 %v957
        %v1558 = vpop.f32.mrf.mxu0
        %v1559 = vadd.f32 %v1270, %v1558
        %v1560 = vpop.f32.mrf.mxu0
        %v1561 = vpop.f32.mrf.mxu0
        %v1562 = vadd.f32 %v1273, %v1561
        %v1563 = vpop.f32.mrf.mxu0
        %1564 = vmatprep.mubr.bf16.mxu0 %v962
        %1565 = vmatmul.mubr.bf16.gmra.mxu0 %v961
        %v1566 = vpop.f32.mrf.mxu0
        %v1567 = vadd.f32 %v1278, %v1566
        %v1568 = vpop.f32.mrf.mxu0
        %v1569 = vpop.f32.mrf.mxu0
        %v1570 = vadd.f32 %v1281, %v1569
        %v1571 = vpop.f32.mrf.mxu0
        %1572 = vmatprep.mubr.bf16.mxu0 %v966
        %1573 = vmatmul.mubr.bf16.gmra.mxu0 %v965
        %v1574 = vpop.f32.mrf.mxu0
        %v1575 = vadd.f32 %v1286, %v1574
        %v1576 = vpop.f32.mrf.mxu0
        %v1577 = vpop.f32.mrf.mxu0
        %v1578 = vadd.f32 %v1289, %v1577
        %v1579 = vpop.f32.mrf.mxu0
        %1580 = vmatprep.mubr.bf16.mxu0 %v970
        %1581 = vmatmul.mubr.bf16.gmra.mxu0 %v969
        %v1582 = vpop.f32.mrf.mxu0
        %v1583 = vadd.f32 %v1294, %v1582
        %v1584 = vpop.f32.mrf.mxu0
        %v1585 = vpop.f32.mrf.mxu0
        %v1586 = vadd.f32 %v1297, %v1585
        %v1587 = vpop.f32.mrf.mxu0
        %1588 = vmatprep.mubr.bf16.mxu0 %v974
        %1589 = vmatmul.mubr.bf16.gmra.mxu0 %v973
        %v1590 = vpop.f32.mrf.mxu0
        %v1591 = vadd.f32 %v1302, %v1590
        %v1592 = vpop.f32.mrf.mxu0
        %v1593 = vpop.f32.mrf.mxu0
        %v1594 = vadd.f32 %v1305, %v1593
        %v1595 = vpop.f32.mrf.mxu0
        %1596 = vmatprep.mubr.bf16.mxu0 %v978
        %1597 = vmatmul.mubr.bf16.gmra.mxu0 %v977
        %v1598 = vpop.f32.mrf.mxu0
        %v1599 = vadd.f32 %v1310, %v1598
        %v1600 = vpop.f32.mrf.mxu0
        %v1601 = vpop.f32.mrf.mxu0
        %v1602 = vadd.f32 %v1313, %v1601
        %v1603 = vpop.f32.mrf.mxu0
        %1604 = vmatprep.mubr.bf16.mxu0 %v982
        %1605 = vmatmul.mubr.bf16.gmra.mxu0 %v981
        %v1606 = vpop.f32.mrf.mxu0
        %v1607 = vadd.f32 %v1318, %v1606
        %v1608 = vpop.f32.mrf.mxu0
        %v1609 = vpop.f32.mrf.mxu0
        %v1610 = vadd.f32 %v1321, %v1609
        %v1611 = vpop.f32.mrf.mxu0
        %1612 = vmatprep.mubr.bf16.mxu0 %v986
        %1613 = vmatmul.mubr.bf16.gmra.mxu0 %v985
        %v1614 = vpop.f32.mrf.mxu0
        %v1615 = vadd.f32 %v1326, %v1614
        %v1616 = vpop.f32.mrf.mxu0
        %v1617 = vpop.f32.mrf.mxu0
        %v1618 = vadd.f32 %v1329, %v1617
        %v1619 = vpop.f32.mrf.mxu0
        %1620 = vmatprep.mubr.bf16.mxu0 %v990
        %1621 = vmatmul.mubr.bf16.gmra.mxu0 %v989
        %v1622 = vpop.f32.mrf.mxu0
        %v1623 = vadd.f32 %v1334, %v1622
        %v1624 = vpop.f32.mrf.mxu0
        %v1625 = vpop.f32.mrf.mxu0
        %v1626 = vadd.f32 %v1337, %v1625
        %v1627 = vpop.f32.mrf.mxu0
        %1628 = vmatprep.mubr.bf16.mxu0 %v994
        %1629 = vmatmul.mubr.bf16.gmra.mxu0 %v993
        %v1630 = vpop.f32.mrf.mxu0
        %v1631 = vadd.f32 %v1342, %v1630
        %v1632 = vpop.f32.mrf.mxu0
        %v1633 = vpop.f32.mrf.mxu0
        %v1634 = vadd.f32 %v1345, %v1633
        %v1635 = vpop.f32.mrf.mxu0
        %1636 = vmatprep.mubr.bf16.mxu0 %v998
        %1637 = vmatmul.mubr.bf16.gmra.mxu0 %v997
        %v1638 = vpop.f32.mrf.mxu0
        %v1639 = vadd.f32 %v1350, %v1638
        %v1640 = vpop.f32.mrf.mxu0
        %v1641 = vpop.f32.mrf.mxu0
        %v1642 = vadd.f32 %v1353, %v1641
        %v1643 = vpop.f32.mrf.mxu0
        %1644 = vmatprep.mubr.bf16.mxu0 %v1002
        %1645 = vmatmul.mubr.bf16.gmra.mxu0 %v1001
        %v1646 = vpop.f32.mrf.mxu0
        %v1647 = vadd.f32 %v1358, %v1646
        %v1648 = vpop.f32.mrf.mxu0
        %v1649 = vpop.f32.mrf.mxu0
        %v1650 = vadd.f32 %v1361, %v1649
        %v1651 = vpop.f32.mrf.mxu0
        %1652 = vmatprep.mubr.bf16.mxu0 %v1006
        %1653 = vmatmul.mubr.bf16.gmra.mxu0 %v1005
        %v1654 = vpop.f32.mrf.mxu0
        %v1655 = vadd.f32 %v1366, %v1654
        %v1656 = vpop.f32.mrf.mxu0
        %v1657 = vpop.f32.mrf.mxu0
        %v1658 = vadd.f32 %v1369, %v1657
        %v1659 = vpop.f32.mrf.mxu0
        %1660 = vmatprep.mubr.bf16.mxu0 %v1010
        %1661 = vmatmul.mubr.bf16.gmra.mxu0 %v1009
        %v1662 = vpop.f32.mrf.mxu0
        %v1663 = vadd.f32 %v1374, %v1662
        %v1664 = vpop.f32.mrf.mxu0
        %v1665 = vpop.f32.mrf.mxu0
        %v1666 = vadd.f32 %v1377, %v1665
        %v1667 = vpop.f32.mrf.mxu0
        %1668 = vmatprep.mubr.bf16.mxu0 %v1014
        %1669 = vmatmul.mubr.bf16.gmra.mxu0 %v1013
        %v1670 = vpop.f32.mrf.mxu0
        %v1671 = vadd.f32 %v1382, %v1670
        %v1672 = vpop.f32.mrf.mxu0
        %v1673 = vpop.f32.mrf.mxu0
        %v1674 = vadd.f32 %v1385, %v1673
        %v1675 = vpop.f32.mrf.mxu0
        %1676 = vmatprep.mubr.bf16.mxu0 %v1018
        %1677 = vmatmul.mubr.bf16.gmra.mxu0 %v1017
        %v1678 = vpop.f32.mrf.mxu0
        %v1679 = vadd.f32 %v1390, %v1678
        %v1680 = vpop.f32.mrf.mxu0
        %v1681 = vpop.f32.mrf.mxu0
        %v1682 = vadd.f32 %v1393, %v1681
        %v1683 = vpop.f32.mrf.mxu0
        %1684 = vmatprep.mubr.bf16.mxu0 %v1022
        %1685 = vmatmul.mubr.bf16.gmra.mxu0 %v1021
        %v1686 = vpop.f32.mrf.mxu0
        %v1687 = vadd.f32 %v1398, %v1686
        %v1688 = vpop.f32.mrf.mxu0
        %v1689 = vpop.f32.mrf.mxu0
        %v1690 = vadd.f32 %v1401, %v1689
        %v1691 = vpop.f32.mrf.mxu0
        %1692 = vmatprep.mubr.bf16.mxu0 %v1026
        %1693 = vmatmul.mubr.bf16.gmra.mxu0 %v1025
        %v1694 = vpop.f32.mrf.mxu0
        %v1695 = vadd.f32 %v1406, %v1694
        %v1696 = vpop.f32.mrf.mxu0
        %v1697 = vpop.f32.mrf.mxu0
        %v1698 = vadd.f32 %v1409, %v1697
        %v1699 = vpop.f32.mrf.mxu0
        %1700 = vmatprep.mubr.bf16.mxu0 %v1030
        %1701 = vmatmul.mubr.bf16.gmra.mxu0 %v1029
        %v1702 = vpop.f32.mrf.mxu0
        %v1703 = vadd.f32 %v1414, %v1702
        %v1704 = vpop.f32.mrf.mxu0
        %v1705 = vpop.f32.mrf.mxu0
        %v1706 = vadd.f32 %v1417, %v1705
        %v1707 = vpop.f32.mrf.mxu0
        %1708 = vmatprep.mubr.bf16.mxu0 %v1034
        %1709 = vmatmul.mubr.bf16.gmra.mxu0 %v1033
        %v1710 = vpop.f32.mrf.mxu0
        %v1711 = vadd.f32 %v1422, %v1710
        %v1712 = vpop.f32.mrf.mxu0
        %v1713 = vpop.f32.mrf.mxu0
        %v1714 = vadd.f32 %v1425, %v1713
        %v1715 = vpop.f32.mrf.mxu0
        %1716 = vmatprep.mubr.bf16.mxu0 %v1038
        %1717 = vmatmul.mubr.bf16.gmra.mxu0 %v1037
        %v1718 = vpop.f32.mrf.mxu0
        %v1719 = vadd.f32 %v1430, %v1718
        %v1720 = vpop.f32.mrf.mxu0
        %v1721 = vpop.f32.mrf.mxu0
        %v1722 = vadd.f32 %v1433, %v1721
        %v1723 = vpop.f32.mrf.mxu0
        %1724 = vmatprep.mubr.bf16.mxu0 %v1042
        %1725 = vmatmul.mubr.bf16.gmra.mxu0 %v1041
        %v1726 = vpop.f32.mrf.mxu0
        %v1727 = vadd.f32 %v1438, %v1726
        %v1728 = vpop.f32.mrf.mxu0
        %v1729 = vpop.f32.mrf.mxu0
        %v1730 = vadd.f32 %v1441, %v1729
        %v1731 = vpop.f32.mrf.mxu0
        %1732 = vmatprep.mubr.bf16.mxu0 %v1046
        %1733 = vmatmul.mubr.bf16.gmra.mxu0 %v1045
        %v1734 = vpop.f32.mrf.mxu0
        %v1735 = vadd.f32 %v1446, %v1734
        %v1736 = vpop.f32.mrf.mxu0
        %v1737 = vpop.f32.mrf.mxu0
        %v1738 = vadd.f32 %v1449, %v1737
        %v1739 = vpop.f32.mrf.mxu0
        %1740 = vmatprep.mubr.bf16.mxu0 %v1050
        %1741 = vmatmul.mubr.bf16.gmra.mxu0 %v1049
        %v1742 = vpop.f32.mrf.mxu0
        %v1743 = vadd.f32 %v1454, %v1742
        %v1744 = vpop.f32.mrf.mxu0
        %v1745 = vpop.f32.mrf.mxu0
        %v1746 = vadd.f32 %v1457, %v1745
        %v1747 = vpop.f32.mrf.mxu0
        %1748 = vmatprep.mubr.bf16.mxu0 %v1054
        %1749 = vmatmul.mubr.bf16.gmra.mxu0 %v1053
        %v1750 = vpop.f32.mrf.mxu0
        %v1751 = vadd.f32 %v1462, %v1750
        %v1752 = vpop.f32.mrf.mxu0
        %v1753 = vpop.f32.mrf.mxu0
        %v1754 = vadd.f32 %v1465, %v1753
        %v1755 = vpop.f32.mrf.mxu0
        %1756 = vmatprep.mubr.bf16.mxu0 %v1058
        %1757 = vmatmul.mubr.bf16.gmra.mxu0 %v1057
        %v1758 = vpop.f32.mrf.mxu0
        %v1759 = vadd.f32 %v1470, %v1758
        %v1760 = vpop.f32.mrf.mxu0
        %v1761 = vpop.f32.mrf.mxu0
        %v1762 = vadd.f32 %v1473, %v1761
        %v1763 = vpop.f32.mrf.mxu0
        %1764 = vdwg.mxu0
        %vm1765 = vcmask 400384
        %1766 = vst.msk [vmem:[%s192] sm:$0xff] %vm1765, %v1511
        %1767 = vst.msk [vmem:[%s192 + $0x8] sm:$0xff] %vm1765, %v1514
        %1768 = vst.msk [vmem:[%s192 + $0x10] sm:$0xff] %vm1765, %v1519
        %1769 = vst.msk [vmem:[%s192 + $0x18] sm:$0xff] %vm1765, %v1522
        %1770 = vst.msk [vmem:[%s192 + $0x20] sm:$0xff] %vm1765, %v1527
        %1771 = vst.msk [vmem:[%s192 + $0x28] sm:$0xff] %vm1765, %v1530
        %1772 = vst.msk [vmem:[%s192 + $0x30] sm:$0xff] %vm1765, %v1535
        %1773 = vst.msk [vmem:[%s192 + $0x38] sm:$0xff] %vm1765, %v1538
        %1774 = vst.msk [vmem:[%s192 + $0x40] sm:$0xff] %vm1765, %v1543
        %1775 = vst.msk [vmem:[%s192 + $0x48] sm:$0xff] %vm1765, %v1546
        %1776 = vst.msk [vmem:[%s192 + $0x50] sm:$0xff] %vm1765, %v1551
        %1777 = vst.msk [vmem:[%s192 + $0x58] sm:$0xff] %vm1765, %v1554
        %1778 = vst.msk [vmem:[%s192 + $0x60] sm:$0xff] %vm1765, %v1559
        %1779 = vst.msk [vmem:[%s192 + $0x68] sm:$0xff] %vm1765, %v1562
        %1780 = vst.msk [vmem:[%s192 + $0x70] sm:$0xff] %vm1765, %v1567
        %1781 = vst.msk [vmem:[%s192 + $0x78] sm:$0xff] %vm1765, %v1570
        %1782 = vst.msk [vmem:[%s192 + $0x80] sm:$0xff] %vm1765, %v1575
        %1783 = vst.msk [vmem:[%s192 + $0x88] sm:$0xff] %vm1765, %v1578
        %1784 = vst.msk [vmem:[%s192 + $0x90] sm:$0xff] %vm1765, %v1583
        %1785 = vst.msk [vmem:[%s192 + $0x98] sm:$0xff] %vm1765, %v1586
        %1786 = vst.msk [vmem:[%s192 + $0xa0] sm:$0xff] %vm1765, %v1591
        %1787 = vst.msk [vmem:[%s192 + $0xa8] sm:$0xff] %vm1765, %v1594
        %1788 = vst.msk [vmem:[%s192 + $0xb0] sm:$0xff] %vm1765, %v1599
        %1789 = vst.msk [vmem:[%s192 + $0xb8] sm:$0xff] %vm1765, %v1602
        %1790 = vst.msk [vmem:[%s192 + $0xc0] sm:$0xff] %vm1765, %v1607
        %1791 = vst.msk [vmem:[%s192 + $0xc8] sm:$0xff] %vm1765, %v1610
        %1792 = vst.msk [vmem:[%s192 + $0xd0] sm:$0xff] %vm1765, %v1615
        %1793 = vst.msk [vmem:[%s192 + $0xd8] sm:$0xff] %vm1765, %v1618
        %1794 = vst.msk [vmem:[%s192 + $0xe0] sm:$0xff] %vm1765, %v1623
        %1795 = vst.msk [vmem:[%s192 + $0xe8] sm:$0xff] %vm1765, %v1626
        %1796 = vst.msk [vmem:[%s192 + $0xf0] sm:$0xff] %vm1765, %v1631
        %1797 = vst.msk [vmem:[%s192 + $0xf8] sm:$0xff] %vm1765, %v1634
        %1798 = vst.msk [vmem:[%s192 + $0x100] sm:$0xff] %vm1765, %v1639
        %1799 = vst.msk [vmem:[%s192 + $0x108] sm:$0xff] %vm1765, %v1642
        %1800 = vst.msk [vmem:[%s192 + $0x110] sm:$0xff] %vm1765, %v1647
        %1801 = vst.msk [vmem:[%s192 + $0x118] sm:$0xff] %vm1765, %v1650
        %1802 = vst.msk [vmem:[%s192 + $0x120] sm:$0xff] %vm1765, %v1655
        %1803 = vst.msk [vmem:[%s192 + $0x128] sm:$0xff] %vm1765, %v1658
        %1804 = vst.msk [vmem:[%s192 + $0x130] sm:$0xff] %vm1765, %v1663
        %1805 = vst.msk [vmem:[%s192 + $0x138] sm:$0xff] %vm1765, %v1666
        %1806 = vst.msk [vmem:[%s192 + $0x140] sm:$0xff] %vm1765, %v1671
        %1807 = vst.msk [vmem:[%s192 + $0x148] sm:$0xff] %vm1765, %v1674
        %1808 = vst.msk [vmem:[%s192 + $0x150] sm:$0xff] %vm1765, %v1679
        %1809 = vst.msk [vmem:[%s192 + $0x158] sm:$0xff] %vm1765, %v1682
        %1810 = vst.msk [vmem:[%s192 + $0x160] sm:$0xff] %vm1765, %v1687
        %1811 = vst.msk [vmem:[%s192 + $0x168] sm:$0xff] %vm1765, %v1690
        %1812 = vst.msk [vmem:[%s192 + $0x170] sm:$0xff] %vm1765, %v1695
        %1813 = vst.msk [vmem:[%s192 + $0x178] sm:$0xff] %vm1765, %v1698
        %1814 = vst.msk [vmem:[%s192 + $0x180] sm:$0xff] %vm1765, %v1703
        %1815 = vst.msk [vmem:[%s192 + $0x188] sm:$0xff] %vm1765, %v1706
        %1816 = vst.msk [vmem:[%s192 + $0x190] sm:$0xff] %vm1765, %v1711
        %1817 = vst.msk [vmem:[%s192 + $0x198] sm:$0xff] %vm1765, %v1714
        %1818 = vst.msk [vmem:[%s192 + $0x1a0] sm:$0xff] %vm1765, %v1719
        %1819 = vst.msk [vmem:[%s192 + $0x1a8] sm:$0xff] %vm1765, %v1722
        %1820 = vst.msk [vmem:[%s192 + $0x1b0] sm:$0xff] %vm1765, %v1727
        %1821 = vst.msk [vmem:[%s192 + $0x1b8] sm:$0xff] %vm1765, %v1730
        %1822 = vst.msk [vmem:[%s192 + $0x1c0] sm:$0xff] %vm1765, %v1735
        %1823 = vst.msk [vmem:[%s192 + $0x1c8] sm:$0xff] %vm1765, %v1738
        %1824 = vst.msk [vmem:[%s192 + $0x1d0] sm:$0xff] %vm1765, %v1743
        %1825 = vst.msk [vmem:[%s192 + $0x1d8] sm:$0xff] %vm1765, %v1746
        %1826 = vst.msk [vmem:[%s192 + $0x1e0] sm:$0xff] %vm1765, %v1751
        %1827 = vst.msk [vmem:[%s192 + $0x1e8] sm:$0xff] %vm1765, %v1754
        %1828 = vst.msk [vmem:[%s192 + $0x1f0] sm:$0xff] %vm1765, %v1759
        %1829 = vst.msk [vmem:[%s192 + $0x1f8] sm:$0xff] %vm1765, %v1762
        %s1830 = smul.u32 64, %s17
        %p1831 = scmp.lt.s32.totalorder %s1830, 255
        %s1832 = scalar_select %p1831, %s1830, 255
        %s1833 = smul.addr %s1832, 8
        %s1834 = scalar_lea.vmem %s3, %s1833
        // Predicated region
        $region37: #{tpu_custom_call.1} parent=31 // pred_check
          %p1835 = pneg %p103
        $region38: #{tpu_custom_call.1} parent=31 // pred_check_branch
          %1837 = sbr.rel (%p1835) target = $region40
        $region39: #{tpu_custom_call.1} parent=31 // pred_region
          %s1838 = smul.u32 64, %s17
        $region40: #{tpu_custom_call.1} parent=31 // pred_fallthru
          _
      $region32: #{tpu_custom_call.1} parent=5 // pred_fallthru
        _
      %p1839 = scmp.le.s32.totalorder 2, %s12
      // Predicated region
      $region41: #{tpu_custom_call.1} parent=5 // pred_check
        %p1840 = pneg %p1839
      $region42: #{tpu_custom_call.1} parent=5 // pred_check_branch
        %1842 = sbr.rel (%p1840) target = $region44
      $region43: #{tpu_custom_call.1} parent=5 // pred_region
        %s1843 = ssub.s32 %s12, 2
        // Predicated region
        $region45: #{tpu_custom_call.1} parent=43 // pred_check
          %p1844 = pneg %p109
        $region46: #{tpu_custom_call.1} parent=43 // pred_check_branch
          %1846 = sbr.rel (%p1844) target = $region48
        $region47: #{tpu_custom_call.1} parent=43 // pred_region
          %s1847 = smul.u32 64, %s18
          %p1848 = scmp.lt.s32.totalorder %s1847, 255
          %s1849 = scalar_select %p1848, %s1847, 255
          %s1850 = smul.addr %s1849, 8
          %s1851 = scalar_lea.vmem %s3, %s1850
        $region48: #{tpu_custom_call.1} parent=43 // pred_fallthru
          _
      $region44: #{tpu_custom_call.1} parent=5 // pred_fallthru
        _
    $region6: #{tpu_custom_call.1} parent=1 // loop_footer
      %s16 = sadd.s32 1, %s12
    $region7: #{tpu_custom_call.1} parent=1 // loop_footer_branch
      %11 = sbr.rel target = $region3
    $region8: #{tpu_custom_call.1} parent=1 // loop_exit
      _
    %1852 = vsyncpa [#allocation3], 1
    %s1853 = scalar_lea.sflag [#allocation3], 1
    %1854 = vsyncpa %s1853, 1

</llo_original>
